<compile_context>
chip_gen: v5e
topology: v5e:2x2
jax: 0.10.0
libtpu: 0.0.40
codegen_flags: <defaults>
</compile_context>

<pallas_src>
import jax
import jax.numpy as jnp
import numpy as np
from jax.experimental import pallas as pl
from jax.experimental.pallas import tpu as pltpu  # noqa: F401  (TPU backend)

SUBLANE = 8
LANE = 128


def char_rnn_kernel(x_ref, h0_ref, w_ihT_ref, w_hhT_ref, bx_ref, bhn_ref,
                    w_outT_ref, b_out_ref, out_ref, logp_ref):
    """Whole GRU forward in one invocation (no grid).

    x_ref     : (S*Bp, I)    bf16, all time steps, batch padded to Bp rows
    h0_ref    : (Bp, Hp)     f32, lane-padded initial hidden state
    w_ihT_ref : (I, 3*Hp)    bf16, pre-transposed, one 128-lane block per gate
    w_hhT_ref : (Hp, 3*Hp)   bf16
    bx_ref    : (1, 3*Hp)    f32, b_ih (+ b_hh for r/z gates), gate-padded
    bhn_ref   : (1, Hp)      f32, b_hh n-gate bias (inside the r-gated term)
    w_outT_ref: (Hp, O)      bf16
    b_out_ref : (1, O)       f32
    out_ref   : (S, Bp, Hp)  f32, per-step hidden states (padded)
    logp_ref  : (Bp, O)      f32, log-softmax of Linear(final hidden)
    """
    Bp, Hp = h0_ref.shape
    S = out_ref.shape[0]

    # Hoisted input projection for every time step (off the serial path):
    # one (S*Bp, I) x (I, 3*Hp) bf16 MXU matmul with f32 accumulation.
    gx_all = jnp.dot(x_ref[...], w_ihT_ref[...],
                     preferred_element_type=jnp.float32) + bx_ref[...]

    w_hhT = w_hhT_ref[...]
    b_hn = bhn_ref[...]

    # Recurrence: fully unrolled at trace time (S is a small compile-time
    # constant), h lives in vregs in f32.
    h = h0_ref[...]
    for t in range(S):
        gx = gx_all[t * Bp:(t + 1) * Bp, :]            # sublane-aligned slice
        gh = jnp.dot(h.astype(w_hhT.dtype), w_hhT,     # bf16 MXU, f32 acc
                     preferred_element_type=jnp.float32)
        r = jax.nn.sigmoid(gx[:, 0:Hp] + gh[:, 0:Hp])              # lane blk 0
        z = jax.nn.sigmoid(gx[:, Hp:2 * Hp] + gh[:, Hp:2 * Hp])    # lane blk 1
        n = jnp.tanh(gx[:, 2 * Hp:] + r * (gh[:, 2 * Hp:] + b_hn))  # lane blk 2
        h = n + z * (h - n)                            # == (1-z)*n + z*h
        out_ref[t, :, :] = h.astype(out_ref.dtype)     # whole-vreg store

    # Linear head + log-softmax on the final hidden state.
    y = jnp.dot(h.astype(w_outT_ref.dtype), w_outT_ref[...],
                preferred_element_type=jnp.float32) + b_out_ref[...]
    m = jnp.max(y, axis=-1, keepdims=True)
    lse = jnp.log(jnp.sum(jnp.exp(y - m), axis=-1, keepdims=True)) + m
    logp_ref[...] = (y - lse).astype(logp_ref.dtype)


def pack_char_rnn_params(w_ih, w_hh, b_ih, b_hh, w_out, b_out):
    """One-time layout prep (call once at parameter-load time, not per step).

    Weights are transposed (K-major RHS for the MXU), each GRU gate gets its
    own 128-lane block, recurrent/output weights are row-padded to Hp, and
    MXU operands are cast to bf16.  Biases stay f32.
    """
    H = w_hh.shape[1]
    Hp = ((H + LANE - 1) // LANE) * LANE
    O = w_out.shape[0]

    def gate_blocks_T(w):            # (3H, K) -> (K, 3*Hp), gate-padded cols
        wT = w.T
        return jnp.concatenate(
            [jnp.pad(wT[:, g * H:(g + 1) * H], ((0, 0), (0, Hp - H)))
             for g in range(3)], axis=1)

    def gate_blocks_b(b):            # (3H,) -> (1, 3*Hp)
        return jnp.concatenate(
            [jnp.pad(b[g * H:(g + 1) * H], (0, Hp - H)) for g in range(3)]
        ).reshape(1, 3 * Hp)

    w_ihT = gate_blocks_T(w_ih).astype(jnp.bfloat16)                 # (I, 3Hp)
    w_hhT = jnp.pad(gate_blocks_T(w_hh),
                    ((0, Hp - H), (0, 0))).astype(jnp.bfloat16)      # (Hp, 3Hp)
    # r/z gates: b_ih + b_hh pre-summed; the n gate keeps b_hh separate
    # because it sits inside the r-gated term (PyTorch GRU semantics).
    bx = gate_blocks_b(jnp.concatenate([b_ih[:2 * H] + b_hh[:2 * H],
                                        b_ih[2 * H:]])).astype(jnp.float32)
    b_hn = jnp.pad(b_hh[2 * H:], (0, Hp - H)).reshape(1, Hp).astype(jnp.float32)
    w_outT = jnp.pad(w_out.T, ((0, Hp - H), (0, 0))).astype(jnp.bfloat16)
    b_out2 = b_out.reshape(1, O).astype(jnp.float32)
    return dict(w_ihT=w_ihT, w_hhT=w_hhT, bx=bx, b_hn=b_hn,
                w_outT=w_outT, b_out=b_out2)


@jax.jit
def char_rnn_forward(x, h0, params):
    """x: (S, B, I); h0: (1, B, H); params from pack_char_rnn_params()."""
    S, B, _ = x.shape
    H = h0.shape[-1]
    Hp = params["w_hhT"].shape[0]
    O = params["w_outT"].shape[1]
    Bp = ((B + SUBLANE - 1) // SUBLANE) * SUBLANE

    # Pad batch to the sublane count so every per-step slice inside the kernel
    # is (8,128)-tile aligned; lane-pad the hidden state to Hp.
    x_p = jnp.zeros((S, Bp, x.shape[-1]), x.dtype).at[:, :B, :].set(x)
    x2 = x_p.reshape(S * Bp, x.shape[-1]).astype(jnp.bfloat16)
    h0_p = jnp.zeros((Bp, Hp), jnp.float32).at[:B, :H].set(
        h0[0].astype(jnp.float32))

    out_pad, logp_pad = pl.pallas_call(
        char_rnn_kernel,
        out_shape=(jax.ShapeDtypeStruct((S, Bp, Hp), jnp.float32),
                   jax.ShapeDtypeStruct((Bp, O), jnp.float32)),
    )(x2, h0_p, params["w_ihT"], params["w_hhT"], params["bx"],
      params["b_hn"], params["w_outT"], params["b_out"])

    output = out_pad[:, :B, :H].astype(x.dtype)        # (S, B, H)
    hidden = output[-1:]                               # (1, B, H) = final h
    logp = logp_pad[:B, :][None].astype(x.dtype)       # (1, B, O)
    return output, hidden, logp


def char_rnn_reference(x, h0, w_ih, w_hh, b_ih, b_hh, w_out, b_out):
    """Plain-JAX f32 reference of the same forward for a correctness check."""
    H = h0.shape[-1]

    def step(h, x_t):
        gx = x_t @ w_ih.T + b_ih
        gh = h @ w_hh.T + b_hh
        r = jax.nn.sigmoid(gx[:, :H] + gh[:, :H])
        z = jax.nn.sigmoid(gx[:, H:2 * H] + gh[:, H:2 * H])
        n = jnp.tanh(gx[:, 2 * H:] + r * gh[:, 2 * H:])
        h_new = (1.0 - z) * n + z * h
        return h_new, h_new

    h_last, outs = jax.lax.scan(step, h0[0], x)
    y = h_last @ w_out.T + b_out
    logp = jax.nn.log_softmax(y, axis=-1)
    return outs, h_last[None], logp[None]


if __name__ == "__main__":
    # Small shapes consistent with the module: seq=8, batch=2,
    # input_size=32, hidden_size=32, output_size=32, n_layers=1 (GRU).
    S, B, I, H, O = 8, 2, 32, 32, 32
    key = jax.random.PRNGKey(0)
    ks = jax.random.split(key, 8)

    stdv = 1.0 / np.sqrt(H)
    w_ih = jax.random.uniform(ks[0], (3 * H, I), jnp.float32, -stdv, stdv)
    w_hh = jax.random.uniform(ks[1], (3 * H, H), jnp.float32, -stdv, stdv)
    b_ih = jax.random.uniform(ks[2], (3 * H,), jnp.float32, -stdv, stdv)
    b_hh = jax.random.uniform(ks[3], (3 * H,), jnp.float32, -stdv, stdv)
    w_out = jax.random.uniform(ks[4], (O, H), jnp.float32, -stdv, stdv)
    b_out = jax.random.uniform(ks[5], (O,), jnp.float32, -stdv, stdv)

    x = jax.random.normal(ks[6], (S, B, I), jnp.float32)
    h0 = jnp.zeros((1, B, H), jnp.float32)            # CharRNN.init_hidden

    params = pack_char_rnn_params(w_ih, w_hh, b_ih, b_hh, w_out, b_out)
    output, hidden, logp = char_rnn_forward(x, h0, params)
    jax.block_until_ready((output, hidden, logp))

    ref_out, ref_hid, ref_logp = char_rnn_reference(x, h0, w_ih, w_hh, b_ih,
                                                    b_hh, w_out, b_out)
    np.testing.assert_allclose(np.asarray(output), np.asarray(ref_out),
                               rtol=1e-2, atol=1e-2)
    np.testing.assert_allclose(np.asarray(hidden), np.asarray(ref_hid),
                               rtol=1e-2, atol=1e-2)
    np.testing.assert_allclose(np.asarray(logp), np.asarray(ref_logp),
                               rtol=1e-2, atol=1e-2)

    print("KERNEL_OK")
</pallas_src>

<mosaic_0001>
module attributes {stable_mosaic.version = 11 : i64} {
  func.func @char_rnn_kernel(%arg0: memref<64x32xbf16, #tpu.memory_space<vmem>>, %arg1: memref<8x128xf32, #tpu.memory_space<vmem>>, %arg2: memref<32x384xbf16, #tpu.memory_space<vmem>>, %arg3: memref<128x384xbf16, #tpu.memory_space<vmem>>, %arg4: memref<1x384xf32, #tpu.memory_space<vmem>>, %arg5: memref<1x128xf32, #tpu.memory_space<vmem>>, %arg6: memref<128x32xbf16, #tpu.memory_space<vmem>>, %arg7: memref<1x32xf32, #tpu.memory_space<vmem>>, %arg8: memref<8x8x128xf32, #tpu.memory_space<vmem>>, %arg9: memref<8x32xf32, #tpu.memory_space<vmem>>) attributes {dimension_semantics = [], scalar_prefetch = 0 : i64, scratch_operands = 0 : i64, tpu.core_type = #tpu.core_type<tc>} {
    %c0 = arith.constant 0 : index
    %c0_0 = arith.constant 0 : index
    %0 = vector.load %arg0[%c0, %c0_0] : memref<64x32xbf16, #tpu.memory_space<vmem>>, vector<64x32xbf16>
    %c0_1 = arith.constant 0 : index
    %c0_2 = arith.constant 0 : index
    %1 = vector.load %arg2[%c0_1, %c0_2] : memref<32x384xbf16, #tpu.memory_space<vmem>>, vector<32x384xbf16>
    %cst = arith.constant dense<0.000000e+00> : vector<64x384xf32>
    %2 = tpu.matmul %0, %1, %cst {dimension_numbers = #tpu.dot_dimension_numbers<[1], [0], [0], [1], [0, 0, 1, 1], [], []>} : vector<64x32xbf16>, vector<32x384xbf16>, vector<64x384xf32> -> vector<64x384xf32>
    %c0_3 = arith.constant 0 : index
    %c0_4 = arith.constant 0 : index
    %3 = vector.load %arg4[%c0_3, %c0_4] : memref<1x384xf32, #tpu.memory_space<vmem>>, vector<1x384xf32>
    %4 = vector.broadcast %3 : vector<1x384xf32> to vector<64x384xf32>
    %5 = arith.addf %2, %4 : vector<64x384xf32>
    %c0_5 = arith.constant 0 : index
    %c0_6 = arith.constant 0 : index
    %6 = vector.load %arg3[%c0_5, %c0_6] : memref<128x384xbf16, #tpu.memory_space<vmem>>, vector<128x384xbf16>
    %c0_7 = arith.constant 0 : index
    %c0_8 = arith.constant 0 : index
    %7 = vector.load %arg5[%c0_7, %c0_8] : memref<1x128xf32, #tpu.memory_space<vmem>>, vector<1x128xf32>
    %c0_9 = arith.constant 0 : index
    %c0_10 = arith.constant 0 : index
    %8 = vector.load %arg1[%c0_9, %c0_10] : memref<8x128xf32, #tpu.memory_space<vmem>>, vector<8x128xf32>
    %9 = vector.extract_strided_slice %5 {offsets = [0, 0], sizes = [8, 384], strides = [1, 1]} : vector<64x384xf32> to vector<8x384xf32>
    %10 = arith.truncf %8 : vector<8x128xf32> to vector<8x128xbf16>
    %cst_11 = arith.constant dense<0.000000e+00> : vector<8x384xf32>
    %11 = tpu.matmul %10, %6, %cst_11 {dimension_numbers = #tpu.dot_dimension_numbers<[1], [0], [0], [1], [0, 0, 1, 1], [], []>} : vector<8x128xbf16>, vector<128x384xbf16>, vector<8x384xf32> -> vector<8x384xf32>
    %12 = vector.extract_strided_slice %9 {offsets = [0, 0], sizes = [8, 128], strides = [1, 1]} : vector<8x384xf32> to vector<8x128xf32>
    %13 = vector.extract_strided_slice %11 {offsets = [0, 0], sizes = [8, 128], strides = [1, 1]} : vector<8x384xf32> to vector<8x128xf32>
    %14 = arith.addf %12, %13 : vector<8x128xf32>
    %15 = arith.negf %14 : vector<8x128xf32>
    %16 = math.exp %15 : vector<8x128xf32>
    %cst_12 = arith.constant 1.000000e+00 : f32
    %17 = vector.broadcast %cst_12 : f32 to vector<8x128xf32>
    %18 = arith.addf %17, %16 : vector<8x128xf32>
    %19 = arith.divf %17, %18 : vector<8x128xf32>
    %20 = vector.extract_strided_slice %9 {offsets = [0, 128], sizes = [8, 128], strides = [1, 1]} : vector<8x384xf32> to vector<8x128xf32>
    %21 = vector.extract_strided_slice %11 {offsets = [0, 128], sizes = [8, 128], strides = [1, 1]} : vector<8x384xf32> to vector<8x128xf32>
    %22 = arith.addf %20, %21 : vector<8x128xf32>
    %23 = arith.negf %22 : vector<8x128xf32>
    %24 = math.exp %23 : vector<8x128xf32>
    %cst_13 = arith.constant 1.000000e+00 : f32
    %25 = vector.broadcast %cst_13 : f32 to vector<8x128xf32>
    %26 = arith.addf %25, %24 : vector<8x128xf32>
    %27 = arith.divf %25, %26 : vector<8x128xf32>
    %28 = vector.extract_strided_slice %9 {offsets = [0, 256], sizes = [8, 128], strides = [1, 1]} : vector<8x384xf32> to vector<8x128xf32>
    %29 = vector.extract_strided_slice %11 {offsets = [0, 256], sizes = [8, 128], strides = [1, 1]} : vector<8x384xf32> to vector<8x128xf32>
    %30 = vector.broadcast %7 : vector<1x128xf32> to vector<8x128xf32>
    %31 = arith.addf %29, %30 : vector<8x128xf32>
    %32 = arith.mulf %19, %31 : vector<8x128xf32>
    %33 = arith.addf %28, %32 : vector<8x128xf32>
    %34 = math.tanh %33 : vector<8x128xf32>
    %35 = arith.subf %8, %34 : vector<8x128xf32>
    %36 = arith.mulf %27, %35 : vector<8x128xf32>
    %37 = arith.addf %34, %36 : vector<8x128xf32>
    %c0_14 = arith.constant 0 : index
    %c0_15 = arith.constant 0 : index
    %c0_16 = arith.constant 0 : index
    %38 = vector.load %arg8[%c0_14, %c0_15, %c0_16] : memref<8x8x128xf32, #tpu.memory_space<vmem>>, vector<1x8x128xf32>
    %39 = vector.shape_cast %38 : vector<1x8x128xf32> to vector<8x128xf32>
    %40 = vector.shape_cast %37 : vector<8x128xf32> to vector<1x8x128xf32>
    tpu.vector_store %arg8[%c0_14, %c0_15, %c0_16], %40 {strides = array<i32>} : memref<8x8x128xf32, #tpu.memory_space<vmem>>, vector<1x8x128xf32>,
    %41 = vector.extract_strided_slice %5 {offsets = [8, 0], sizes = [8, 384], strides = [1, 1]} : vector<64x384xf32> to vector<8x384xf32>
    %42 = arith.truncf %37 : vector<8x128xf32> to vector<8x128xbf16>
    %cst_17 = arith.constant dense<0.000000e+00> : vector<8x384xf32>
    %43 = tpu.matmul %42, %6, %cst_17 {dimension_numbers = #tpu.dot_dimension_numbers<[1], [0], [0], [1], [0, 0, 1, 1], [], []>} : vector<8x128xbf16>, vector<128x384xbf16>, vector<8x384xf32> -> vector<8x384xf32>
    %44 = vector.extract_strided_slice %41 {offsets = [0, 0], sizes = [8, 128], strides = [1, 1]} : vector<8x384xf32> to vector<8x128xf32>
    %45 = vector.extract_strided_slice %43 {offsets = [0, 0], sizes = [8, 128], strides = [1, 1]} : vector<8x384xf32> to vector<8x128xf32>
    %46 = arith.addf %44, %45 : vector<8x128xf32>
    %47 = arith.negf %46 : vector<8x128xf32>
    %48 = math.exp %47 : vector<8x128xf32>
    %cst_18 = arith.constant 1.000000e+00 : f32
    %49 = vector.broadcast %cst_18 : f32 to vector<8x128xf32>
    %50 = arith.addf %49, %48 : vector<8x128xf32>
    %51 = arith.divf %49, %50 : vector<8x128xf32>
    %52 = vector.extract_strided_slice %41 {offsets = [0, 128], sizes = [8, 128], strides = [1, 1]} : vector<8x384xf32> to vector<8x128xf32>
    %53 = vector.extract_strided_slice %43 {offsets = [0, 128], sizes = [8, 128], strides = [1, 1]} : vector<8x384xf32> to vector<8x128xf32>
    %54 = arith.addf %52, %53 : vector<8x128xf32>
    %55 = arith.negf %54 : vector<8x128xf32>
    %56 = math.exp %55 : vector<8x128xf32>
    %cst_19 = arith.constant 1.000000e+00 : f32
    %57 = vector.broadcast %cst_19 : f32 to vector<8x128xf32>
    %58 = arith.addf %57, %56 : vector<8x128xf32>
    %59 = arith.divf %57, %58 : vector<8x128xf32>
    %60 = vector.extract_strided_slice %41 {offsets = [0, 256], sizes = [8, 128], strides = [1, 1]} : vector<8x384xf32> to vector<8x128xf32>
    %61 = vector.extract_strided_slice %43 {offsets = [0, 256], sizes = [8, 128], strides = [1, 1]} : vector<8x384xf32> to vector<8x128xf32>
    %62 = vector.broadcast %7 : vector<1x128xf32> to vector<8x128xf32>
    %63 = arith.addf %61, %62 : vector<8x128xf32>
    %64 = arith.mulf %51, %63 : vector<8x128xf32>
    %65 = arith.addf %60, %64 : vector<8x128xf32>
    %66 = math.tanh %65 : vector<8x128xf32>
    %67 = arith.subf %37, %66 : vector<8x128xf32>
    %68 = arith.mulf %59, %67 : vector<8x128xf32>
    %69 = arith.addf %66, %68 : vector<8x128xf32>
    %c1 = arith.constant 1 : index
    %c0_20 = arith.constant 0 : index
    %c0_21 = arith.constant 0 : index
    %70 = vector.load %arg8[%c1, %c0_20, %c0_21] : memref<8x8x128xf32, #tpu.memory_space<vmem>>, vector<1x8x128xf32>
    %71 = vector.shape_cast %70 : vector<1x8x128xf32> to vector<8x128xf32>
    %72 = vector.shape_cast %69 : vector<8x128xf32> to vector<1x8x128xf32>
    tpu.vector_store %arg8[%c1, %c0_20, %c0_21], %72 {strides = array<i32>} : memref<8x8x128xf32, #tpu.memory_space<vmem>>, vector<1x8x128xf32>,
    %73 = vector.extract_strided_slice %5 {offsets = [16, 0], sizes = [8, 384], strides = [1, 1]} : vector<64x384xf32> to vector<8x384xf32>
    %74 = arith.truncf %69 : vector<8x128xf32> to vector<8x128xbf16>
    %cst_22 = arith.constant dense<0.000000e+00> : vector<8x384xf32>
    %75 = tpu.matmul %74, %6, %cst_22 {dimension_numbers = #tpu.dot_dimension_numbers<[1], [0], [0], [1], [0, 0, 1, 1], [], []>} : vector<8x128xbf16>, vector<128x384xbf16>, vector<8x384xf32> -> vector<8x384xf32>
    %76 = vector.extract_strided_slice %73 {offsets = [0, 0], sizes = [8, 128], strides = [1, 1]} : vector<8x384xf32> to vector<8x128xf32>
    %77 = vector.extract_strided_slice %75 {offsets = [0, 0], sizes = [8, 128], strides = [1, 1]} : vector<8x384xf32> to vector<8x128xf32>
    %78 = arith.addf %76, %77 : vector<8x128xf32>
    %79 = arith.negf %78 : vector<8x128xf32>
    %80 = math.exp %79 : vector<8x128xf32>
    %cst_23 = arith.constant 1.000000e+00 : f32
    %81 = vector.broadcast %cst_23 : f32 to vector<8x128xf32>
    %82 = arith.addf %81, %80 : vector<8x128xf32>
    %83 = arith.divf %81, %82 : vector<8x128xf32>
    %84 = vector.extract_strided_slice %73 {offsets = [0, 128], sizes = [8, 128], strides = [1, 1]} : vector<8x384xf32> to vector<8x128xf32>
    %85 = vector.extract_strided_slice %75 {offsets = [0, 128], sizes = [8, 128], strides = [1, 1]} : vector<8x384xf32> to vector<8x128xf32>
    %86 = arith.addf %84, %85 : vector<8x128xf32>
    %87 = arith.negf %86 : vector<8x128xf32>
    %88 = math.exp %87 : vector<8x128xf32>
    %cst_24 = arith.constant 1.000000e+00 : f32
    %89 = vector.broadcast %cst_24 : f32 to vector<8x128xf32>
    %90 = arith.addf %89, %88 : vector<8x128xf32>
    %91 = arith.divf %89, %90 : vector<8x128xf32>
    %92 = vector.extract_strided_slice %73 {offsets = [0, 256], sizes = [8, 128], strides = [1, 1]} : vector<8x384xf32> to vector<8x128xf32>
    %93 = vector.extract_strided_slice %75 {offsets = [0, 256], sizes = [8, 128], strides = [1, 1]} : vector<8x384xf32> to vector<8x128xf32>
    %94 = vector.broadcast %7 : vector<1x128xf32> to vector<8x128xf32>
    %95 = arith.addf %93, %94 : vector<8x128xf32>
    %96 = arith.mulf %83, %95 : vector<8x128xf32>
    %97 = arith.addf %92, %96 : vector<8x128xf32>
    %98 = math.tanh %97 : vector<8x128xf32>
    %99 = arith.subf %69, %98 : vector<8x128xf32>
    %100 = arith.mulf %91, %99 : vector<8x128xf32>
    %101 = arith.addf %98, %100 : vector<8x128xf32>
    %c2 = arith.constant 2 : index
    %c0_25 = arith.constant 0 : index
    %c0_26 = arith.constant 0 : index
    %102 = vector.load %arg8[%c2, %c0_25, %c0_26] : memref<8x8x128xf32, #tpu.memory_space<vmem>>, vector<1x8x128xf32>
    %103 = vector.shape_cast %102 : vector<1x8x128xf32> to vector<8x128xf32>
    %104 = vector.shape_cast %101 : vector<8x128xf32> to vector<1x8x128xf32>
    tpu.vector_store %arg8[%c2, %c0_25, %c0_26], %104 {strides = array<i32>} : memref<8x8x128xf32, #tpu.memory_space<vmem>>, vector<1x8x128xf32>,
    %105 = vector.extract_strided_slice %5 {offsets = [24, 0], sizes = [8, 384], strides = [1, 1]} : vector<64x384xf32> to vector<8x384xf32>
    %106 = arith.truncf %101 : vector<8x128xf32> to vector<8x128xbf16>
    %cst_27 = arith.constant dense<0.000000e+00> : vector<8x384xf32>
    %107 = tpu.matmul %106, %6, %cst_27 {dimension_numbers = #tpu.dot_dimension_numbers<[1], [0], [0], [1], [0, 0, 1, 1], [], []>} : vector<8x128xbf16>, vector<128x384xbf16>, vector<8x384xf32> -> vector<8x384xf32>
    %108 = vector.extract_strided_slice %105 {offsets = [0, 0], sizes = [8, 128], strides = [1, 1]} : vector<8x384xf32> to vector<8x128xf32>
    %109 = vector.extract_strided_slice %107 {offsets = [0, 0], sizes = [8, 128], strides = [1, 1]} : vector<8x384xf32> to vector<8x128xf32>
    %110 = arith.addf %108, %109 : vector<8x128xf32>
    %111 = arith.negf %110 : vector<8x128xf32>
    %112 = math.exp %111 : vector<8x128xf32>
    %cst_28 = arith.constant 1.000000e+00 : f32
    %113 = vector.broadcast %cst_28 : f32 to vector<8x128xf32>
    %114 = arith.addf %113, %112 : vector<8x128xf32>
    %115 = arith.divf %113, %114 : vector<8x128xf32>
    %116 = vector.extract_strided_slice %105 {offsets = [0, 128], sizes = [8, 128], strides = [1, 1]} : vector<8x384xf32> to vector<8x128xf32>
    %117 = vector.extract_strided_slice %107 {offsets = [0, 128], sizes = [8, 128], strides = [1, 1]} : vector<8x384xf32> to vector<8x128xf32>
    %118 = arith.addf %116, %117 : vector<8x128xf32>
    %119 = arith.negf %118 : vector<8x128xf32>
    %120 = math.exp %119 : vector<8x128xf32>
    %cst_29 = arith.constant 1.000000e+00 : f32
    %121 = vector.broadcast %cst_29 : f32 to vector<8x128xf32>
    %122 = arith.addf %121, %120 : vector<8x128xf32>
    %123 = arith.divf %121, %122 : vector<8x128xf32>
    %124 = vector.extract_strided_slice %105 {offsets = [0, 256], sizes = [8, 128], strides = [1, 1]} : vector<8x384xf32> to vector<8x128xf32>
    %125 = vector.extract_strided_slice %107 {offsets = [0, 256], sizes = [8, 128], strides = [1, 1]} : vector<8x384xf32> to vector<8x128xf32>
    %126 = vector.broadcast %7 : vector<1x128xf32> to vector<8x128xf32>
    %127 = arith.addf %125, %126 : vector<8x128xf32>
    %128 = arith.mulf %115, %127 : vector<8x128xf32>
    %129 = arith.addf %124, %128 : vector<8x128xf32>
    %130 = math.tanh %129 : vector<8x128xf32>
    %131 = arith.subf %101, %130 : vector<8x128xf32>
    %132 = arith.mulf %123, %131 : vector<8x128xf32>
    %133 = arith.addf %130, %132 : vector<8x128xf32>
    %c3 = arith.constant 3 : index
    %c0_30 = arith.constant 0 : index
    %c0_31 = arith.constant 0 : index
    %134 = vector.load %arg8[%c3, %c0_30, %c0_31] : memref<8x8x128xf32, #tpu.memory_space<vmem>>, vector<1x8x128xf32>
    %135 = vector.shape_cast %134 : vector<1x8x128xf32> to vector<8x128xf32>
    %136 = vector.shape_cast %133 : vector<8x128xf32> to vector<1x8x128xf32>
    tpu.vector_store %arg8[%c3, %c0_30, %c0_31], %136 {strides = array<i32>} : memref<8x8x128xf32, #tpu.memory_space<vmem>>, vector<1x8x128xf32>,
    %137 = vector.extract_strided_slice %5 {offsets = [32, 0], sizes = [8, 384], strides = [1, 1]} : vector<64x384xf32> to vector<8x384xf32>
    %138 = arith.truncf %133 : vector<8x128xf32> to vector<8x128xbf16>
    %cst_32 = arith.constant dense<0.000000e+00> : vector<8x384xf32>
    %139 = tpu.matmul %138, %6, %cst_32 {dimension_numbers = #tpu.dot_dimension_numbers<[1], [0], [0], [1], [0, 0, 1, 1], [], []>} : vector<8x128xbf16>, vector<128x384xbf16>, vector<8x384xf32> -> vector<8x384xf32>
    %140 = vector.extract_strided_slice %137 {offsets = [0, 0], sizes = [8, 128], strides = [1, 1]} : vector<8x384xf32> to vector<8x128xf32>
    %141 = vector.extract_strided_slice %139 {offsets = [0, 0], sizes = [8, 128], strides = [1, 1]} : vector<8x384xf32> to vector<8x128xf32>
    %142 = arith.addf %140, %141 : vector<8x128xf32>
    %143 = arith.negf %142 : vector<8x128xf32>
    %144 = math.exp %143 : vector<8x128xf32>
    %cst_33 = arith.constant 1.000000e+00 : f32
    %145 = vector.broadcast %cst_33 : f32 to vector<8x128xf32>
    %146 = arith.addf %145, %144 : vector<8x128xf32>
    %147 = arith.divf %145, %146 : vector<8x128xf32>
    %148 = vector.extract_strided_slice %137 {offsets = [0, 128], sizes = [8, 128], strides = [1, 1]} : vector<8x384xf32> to vector<8x128xf32>
    %149 = vector.extract_strided_slice %139 {offsets = [0, 128], sizes = [8, 128], strides = [1, 1]} : vector<8x384xf32> to vector<8x128xf32>
    %150 = arith.addf %148, %149 : vector<8x128xf32>
    %151 = arith.negf %150 : vector<8x128xf32>
    %152 = math.exp %151 : vector<8x128xf32>
    %cst_34 = arith.constant 1.000000e+00 : f32
    %153 = vector.broadcast %cst_34 : f32 to vector<8x128xf32>
    %154 = arith.addf %153, %152 : vector<8x128xf32>
    %155 = arith.divf %153, %154 : vector<8x128xf32>
    %156 = vector.extract_strided_slice %137 {offsets = [0, 256], sizes = [8, 128], strides = [1, 1]} : vector<8x384xf32> to vector<8x128xf32>
    %157 = vector.extract_strided_slice %139 {offsets = [0, 256], sizes = [8, 128], strides = [1, 1]} : vector<8x384xf32> to vector<8x128xf32>
    %158 = vector.broadcast %7 : vector<1x128xf32> to vector<8x128xf32>
    %159 = arith.addf %157, %158 : vector<8x128xf32>
    %160 = arith.mulf %147, %159 : vector<8x128xf32>
    %161 = arith.addf %156, %160 : vector<8x128xf32>
    %162 = math.tanh %161 : vector<8x128xf32>
    %163 = arith.subf %133, %162 : vector<8x128xf32>
    %164 = arith.mulf %155, %163 : vector<8x128xf32>
    %165 = arith.addf %162, %164 : vector<8x128xf32>
    %c4 = arith.constant 4 : index
    %c0_35 = arith.constant 0 : index
    %c0_36 = arith.constant 0 : index
    %166 = vector.load %arg8[%c4, %c0_35, %c0_36] : memref<8x8x128xf32, #tpu.memory_space<vmem>>, vector<1x8x128xf32>
    %167 = vector.shape_cast %166 : vector<1x8x128xf32> to vector<8x128xf32>
    %168 = vector.shape_cast %165 : vector<8x128xf32> to vector<1x8x128xf32>
    tpu.vector_store %arg8[%c4, %c0_35, %c0_36], %168 {strides = array<i32>} : memref<8x8x128xf32, #tpu.memory_space<vmem>>, vector<1x8x128xf32>,
    %169 = vector.extract_strided_slice %5 {offsets = [40, 0], sizes = [8, 384], strides = [1, 1]} : vector<64x384xf32> to vector<8x384xf32>
    %170 = arith.truncf %165 : vector<8x128xf32> to vector<8x128xbf16>
    %cst_37 = arith.constant dense<0.000000e+00> : vector<8x384xf32>
    %171 = tpu.matmul %170, %6, %cst_37 {dimension_numbers = #tpu.dot_dimension_numbers<[1], [0], [0], [1], [0, 0, 1, 1], [], []>} : vector<8x128xbf16>, vector<128x384xbf16>, vector<8x384xf32> -> vector<8x384xf32>
    %172 = vector.extract_strided_slice %169 {offsets = [0, 0], sizes = [8, 128], strides = [1, 1]} : vector<8x384xf32> to vector<8x128xf32>
    %173 = vector.extract_strided_slice %171 {offsets = [0, 0], sizes = [8, 128], strides = [1, 1]} : vector<8x384xf32> to vector<8x128xf32>
    %174 = arith.addf %172, %173 : vector<8x128xf32>
    %175 = arith.negf %174 : vector<8x128xf32>
    %176 = math.exp %175 : vector<8x128xf32>
    %cst_38 = arith.constant 1.000000e+00 : f32
    %177 = vector.broadcast %cst_38 : f32 to vector<8x128xf32>
    %178 = arith.addf %177, %176 : vector<8x128xf32>
    %179 = arith.divf %177, %178 : vector<8x128xf32>
    %180 = vector.extract_strided_slice %169 {offsets = [0, 128], sizes = [8, 128], strides = [1, 1]} : vector<8x384xf32> to vector<8x128xf32>
    %181 = vector.extract_strided_slice %171 {offsets = [0, 128], sizes = [8, 128], strides = [1, 1]} : vector<8x384xf32> to vector<8x128xf32>
    %182 = arith.addf %180, %181 : vector<8x128xf32>
    %183 = arith.negf %182 : vector<8x128xf32>
    %184 = math.exp %183 : vector<8x128xf32>
    %cst_39 = arith.constant 1.000000e+00 : f32
    %185 = vector.broadcast %cst_39 : f32 to vector<8x128xf32>
    %186 = arith.addf %185, %184 : vector<8x128xf32>
    %187 = arith.divf %185, %186 : vector<8x128xf32>
    %188 = vector.extract_strided_slice %169 {offsets = [0, 256], sizes = [8, 128], strides = [1, 1]} : vector<8x384xf32> to vector<8x128xf32>
    %189 = vector.extract_strided_slice %171 {offsets = [0, 256], sizes = [8, 128], strides = [1, 1]} : vector<8x384xf32> to vector<8x128xf32>
    %190 = vector.broadcast %7 : vector<1x128xf32> to vector<8x128xf32>
    %191 = arith.addf %189, %190 : vector<8x128xf32>
    %192 = arith.mulf %179, %191 : vector<8x128xf32>
    %193 = arith.addf %188, %192 : vector<8x128xf32>
    %194 = math.tanh %193 : vector<8x128xf32>
    %195 = arith.subf %165, %194 : vector<8x128xf32>
    %196 = arith.mulf %187, %195 : vector<8x128xf32>
    %197 = arith.addf %194, %196 : vector<8x128xf32>
    %c5 = arith.constant 5 : index
    %c0_40 = arith.constant 0 : index
    %c0_41 = arith.constant 0 : index
    %198 = vector.load %arg8[%c5, %c0_40, %c0_41] : memref<8x8x128xf32, #tpu.memory_space<vmem>>, vector<1x8x128xf32>
    %199 = vector.shape_cast %198 : vector<1x8x128xf32> to vector<8x128xf32>
    %200 = vector.shape_cast %197 : vector<8x128xf32> to vector<1x8x128xf32>
    tpu.vector_store %arg8[%c5, %c0_40, %c0_41], %200 {strides = array<i32>} : memref<8x8x128xf32, #tpu.memory_space<vmem>>, vector<1x8x128xf32>,
    %201 = vector.extract_strided_slice %5 {offsets = [48, 0], sizes = [8, 384], strides = [1, 1]} : vector<64x384xf32> to vector<8x384xf32>
    %202 = arith.truncf %197 : vector<8x128xf32> to vector<8x128xbf16>
    %cst_42 = arith.constant dense<0.000000e+00> : vector<8x384xf32>
    %203 = tpu.matmul %202, %6, %cst_42 {dimension_numbers = #tpu.dot_dimension_numbers<[1], [0], [0], [1], [0, 0, 1, 1], [], []>} : vector<8x128xbf16>, vector<128x384xbf16>, vector<8x384xf32> -> vector<8x384xf32>
    %204 = vector.extract_strided_slice %201 {offsets = [0, 0], sizes = [8, 128], strides = [1, 1]} : vector<8x384xf32> to vector<8x128xf32>
    %205 = vector.extract_strided_slice %203 {offsets = [0, 0], sizes = [8, 128], strides = [1, 1]} : vector<8x384xf32> to vector<8x128xf32>
    %206 = arith.addf %204, %205 : vector<8x128xf32>
    %207 = arith.negf %206 : vector<8x128xf32>
    %208 = math.exp %207 : vector<8x128xf32>
    %cst_43 = arith.constant 1.000000e+00 : f32
    %209 = vector.broadcast %cst_43 : f32 to vector<8x128xf32>
    %210 = arith.addf %209, %208 : vector<8x128xf32>
    %211 = arith.divf %209, %210 : vector<8x128xf32>
    %212 = vector.extract_strided_slice %201 {offsets = [0, 128], sizes = [8, 128], strides = [1, 1]} : vector<8x384xf32> to vector<8x128xf32>
    %213 = vector.extract_strided_slice %203 {offsets = [0, 128], sizes = [8, 128], strides = [1, 1]} : vector<8x384xf32> to vector<8x128xf32>
    %214 = arith.addf %212, %213 : vector<8x128xf32>
    %215 = arith.negf %214 : vector<8x128xf32>
    %216 = math.exp %215 : vector<8x128xf32>
    %cst_44 = arith.constant 1.000000e+00 : f32
    %217 = vector.broadcast %cst_44 : f32 to vector<8x128xf32>
    %218 = arith.addf %217, %216 : vector<8x128xf32>
    %219 = arith.divf %217, %218 : vector<8x128xf32>
    %220 = vector.extract_strided_slice %201 {offsets = [0, 256], sizes = [8, 128], strides = [1, 1]} : vector<8x384xf32> to vector<8x128xf32>
    %221 = vector.extract_strided_slice %203 {offsets = [0, 256], sizes = [8, 128], strides = [1, 1]} : vector<8x384xf32> to vector<8x128xf32>
    %222 = vector.broadcast %7 : vector<1x128xf32> to vector<8x128xf32>
    %223 = arith.addf %221, %222 : vector<8x128xf32>
    %224 = arith.mulf %211, %223 : vector<8x128xf32>
    %225 = arith.addf %220, %224 : vector<8x128xf32>
    %226 = math.tanh %225 : vector<8x128xf32>
    %227 = arith.subf %197, %226 : vector<8x128xf32>
    %228 = arith.mulf %219, %227 : vector<8x128xf32>
    %229 = arith.addf %226, %228 : vector<8x128xf32>
    %c6 = arith.constant 6 : index
    %c0_45 = arith.constant 0 : index
    %c0_46 = arith.constant 0 : index
    %230 = vector.load %arg8[%c6, %c0_45, %c0_46] : memref<8x8x128xf32, #tpu.memory_space<vmem>>, vector<1x8x128xf32>
    %231 = vector.shape_cast %230 : vector<1x8x128xf32> to vector<8x128xf32>
    %232 = vector.shape_cast %229 : vector<8x128xf32> to vector<1x8x128xf32>
    tpu.vector_store %arg8[%c6, %c0_45, %c0_46], %232 {strides = array<i32>} : memref<8x8x128xf32, #tpu.memory_space<vmem>>, vector<1x8x128xf32>,
    %233 = vector.extract_strided_slice %5 {offsets = [56, 0], sizes = [8, 384], strides = [1, 1]} : vector<64x384xf32> to vector<8x384xf32>
    %234 = arith.truncf %229 : vector<8x128xf32> to vector<8x128xbf16>
    %cst_47 = arith.constant dense<0.000000e+00> : vector<8x384xf32>
    %235 = tpu.matmul %234, %6, %cst_47 {dimension_numbers = #tpu.dot_dimension_numbers<[1], [0], [0], [1], [0, 0, 1, 1], [], []>} : vector<8x128xbf16>, vector<128x384xbf16>, vector<8x384xf32> -> vector<8x384xf32>
    %236 = vector.extract_strided_slice %233 {offsets = [0, 0], sizes = [8, 128], strides = [1, 1]} : vector<8x384xf32> to vector<8x128xf32>
    %237 = vector.extract_strided_slice %235 {offsets = [0, 0], sizes = [8, 128], strides = [1, 1]} : vector<8x384xf32> to vector<8x128xf32>
    %238 = arith.addf %236, %237 : vector<8x128xf32>
    %239 = arith.negf %238 : vector<8x128xf32>
    %240 = math.exp %239 : vector<8x128xf32>
    %cst_48 = arith.constant 1.000000e+00 : f32
    %241 = vector.broadcast %cst_48 : f32 to vector<8x128xf32>
    %242 = arith.addf %241, %240 : vector<8x128xf32>
    %243 = arith.divf %241, %242 : vector<8x128xf32>
    %244 = vector.extract_strided_slice %233 {offsets = [0, 128], sizes = [8, 128], strides = [1, 1]} : vector<8x384xf32> to vector<8x128xf32>
    %245 = vector.extract_strided_slice %235 {offsets = [0, 128], sizes = [8, 128], strides = [1, 1]} : vector<8x384xf32> to vector<8x128xf32>
    %246 = arith.addf %244, %245 : vector<8x128xf32>
    %247 = arith.negf %246 : vector<8x128xf32>
    %248 = math.exp %247 : vector<8x128xf32>
    %cst_49 = arith.constant 1.000000e+00 : f32
    %249 = vector.broadcast %cst_49 : f32 to vector<8x128xf32>
    %250 = arith.addf %249, %248 : vector<8x128xf32>
    %251 = arith.divf %249, %250 : vector<8x128xf32>
    %252 = vector.extract_strided_slice %233 {offsets = [0, 256], sizes = [8, 128], strides = [1, 1]} : vector<8x384xf32> to vector<8x128xf32>
    %253 = vector.extract_strided_slice %235 {offsets = [0, 256], sizes = [8, 128], strides = [1, 1]} : vector<8x384xf32> to vector<8x128xf32>
    %254 = vector.broadcast %7 : vector<1x128xf32> to vector<8x128xf32>
    %255 = arith.addf %253, %254 : vector<8x128xf32>
    %256 = arith.mulf %243, %255 : vector<8x128xf32>
    %257 = arith.addf %252, %256 : vector<8x128xf32>
    %258 = math.tanh %257 : vector<8x128xf32>
    %259 = arith.subf %229, %258 : vector<8x128xf32>
    %260 = arith.mulf %251, %259 : vector<8x128xf32>
    %261 = arith.addf %258, %260 : vector<8x128xf32>
    %c7 = arith.constant 7 : index
    %c0_50 = arith.constant 0 : index
    %c0_51 = arith.constant 0 : index
    %262 = vector.load %arg8[%c7, %c0_50, %c0_51] : memref<8x8x128xf32, #tpu.memory_space<vmem>>, vector<1x8x128xf32>
    %263 = vector.shape_cast %262 : vector<1x8x128xf32> to vector<8x128xf32>
    %264 = vector.shape_cast %261 : vector<8x128xf32> to vector<1x8x128xf32>
    tpu.vector_store %arg8[%c7, %c0_50, %c0_51], %264 {strides = array<i32>} : memref<8x8x128xf32, #tpu.memory_space<vmem>>, vector<1x8x128xf32>,
    %265 = arith.truncf %261 : vector<8x128xf32> to vector<8x128xbf16>
    %c0_52 = arith.constant 0 : index
    %c0_53 = arith.constant 0 : index
    %266 = vector.load %arg6[%c0_52, %c0_53] : memref<128x32xbf16, #tpu.memory_space<vmem>>, vector<128x32xbf16>
    %cst_54 = arith.constant dense<0.000000e+00> : vector<8x32xf32>
    %267 = tpu.matmul %265, %266, %cst_54 {dimension_numbers = #tpu.dot_dimension_numbers<[1], [0], [0], [1], [0, 0, 1, 1], [], []>} : vector<8x128xbf16>, vector<128x32xbf16>, vector<8x32xf32> -> vector<8x32xf32>
    %c0_55 = arith.constant 0 : index
    %c0_56 = arith.constant 0 : index
    %268 = vector.load %arg7[%c0_55, %c0_56] : memref<1x32xf32, #tpu.memory_space<vmem>>, vector<1x32xf32>
    %269 = vector.broadcast %268 : vector<1x32xf32> to vector<8x32xf32>
    %270 = arith.addf %267, %269 : vector<8x32xf32>
    %cst_57 = arith.constant dense<0xFF800000> : vector<8xf32>
    %271 = vector.multi_reduction <maximumf>, %270, %cst_57 [1] : vector<8x32xf32> to vector<8xf32>
    %272 = vector.shape_cast %271 : vector<8xf32> to vector<8x1xf32>
    %273 = vector.broadcast %272 : vector<8x1xf32> to vector<8x32xf32>
    %274 = arith.subf %270, %273 : vector<8x32xf32>
    %275 = math.exp %274 : vector<8x32xf32>
    %cst_58 = arith.constant dense<0.000000e+00> : vector<8xf32>
    %276 = vector.multi_reduction <add>, %275, %cst_58 [1] : vector<8x32xf32> to vector<8xf32>
    %277 = vector.shape_cast %276 : vector<8xf32> to vector<8x1xf32>
    %278 = math.log %277 : vector<8x1xf32>
    %279 = arith.addf %278, %272 : vector<8x1xf32>
    %280 = vector.broadcast %279 : vector<8x1xf32> to vector<8x32xf32>
    %281 = arith.subf %270, %280 : vector<8x32xf32>
    %c0_59 = arith.constant 0 : index
    %c0_60 = arith.constant 0 : index
    %282 = vector.load %arg9[%c0_59, %c0_60] : memref<8x32xf32, #tpu.memory_space<vmem>>, vector<8x32xf32>
    tpu.vector_store %arg9[%c0_59, %c0_60], %281 {strides = array<i32>} : memref<8x32xf32, #tpu.memory_space<vmem>>, vector<8x32xf32>,
    return
  }
}

</mosaic_0001>

<llo_original>
// kernel: char_rnn_forward.1
$region0: #{char_rnn_forward.1}
  #allocation0 [shape = 'u32[]', space=smem, size = 0x4, offset = 0x4, fixed_abs, tag = 'smem constant byte address 0x4 - core index']
  #allocation1 [shape = 'u32[72,128]{1,0:T(1,128)}', space=vmem, size = 0x9000, scoped, tag = 'internal scratch']
  %s0 = inlined_call_operand.vmem [shape: bf16[64,32], index: 0, kind: input, shape index: {}]
  %s1 = inlined_call_operand.vmem [shape: f32[8,128], index: 1, kind: input, shape index: {}]
  %s2 = inlined_call_operand.vmem [shape: bf16[32,384], index: 2, kind: input, shape index: {}]
  %s3 = inlined_call_operand.hbm [shape: bf16[128,384], index: 3, kind: input, shape index: {}]
  %s4 = inlined_call_operand.vmem [shape: f32[1,384], index: 4, kind: input, shape index: {}]
  %s5 = inlined_call_operand.vmem [shape: f32[1,128], index: 5, kind: input, shape index: {}]
  %s6 = inlined_call_operand.vmem [shape: bf16[128,32], index: 6, kind: input, shape index: {}]
  %s7 = inlined_call_operand.vmem [shape: f32[1,32], index: 7, kind: input, shape index: {}]
  %s8 = inlined_call_operand.vmem [shape: f32[8,8,128], index: 8, kind: output, shape index: {0}]
  %s9 = inlined_call_operand.vmem [shape: f32[8,32], index: 9, kind: output, shape index: {1}]
  %10 = xla_tuple %s8, %s9
  %s11 = sld [smem:[#allocation0]]
  $region54: #{char_rnn_forward.1} parent=0
    _
  %s13 = ssub.s32 1, %s11
  %s14 = scalar_select 0, %s13, %s11
  $region1: #{char_rnn_forward.1} parent=0
    #allocation2 [shape = 'u8[98304]{0}', space=vmem, size = 0x18000, scoped, tag = 'input window, operand 3, single buffered']
    #allocation3 [shape = 's32[1]{0}', space=sflag, size = 0x4, scoped, tag = 'scoped memory for char_rnn_forward.1']
    %15 = vsyncpa [#allocation3], 0
    // Predicated region
    $region2: #{char_rnn_forward.1} parent=1 // pred_check
      _
    $region3: #{char_rnn_forward.1} parent=1 // pred_check_branch
      %17 = sbr.rel (0) target = $region5
    $region4: #{char_rnn_forward.1} parent=1 // pred_region
      _
    $region5: #{char_rnn_forward.1} parent=1 // pred_fallthru
      _
    // Predicated region
    $region6: #{char_rnn_forward.1} parent=1 // pred_check
      _
    $region7: #{char_rnn_forward.1} parent=1 // pred_check_branch
      %19 = sbr.rel (0) target = $region9
    $region8: #{char_rnn_forward.1} parent=1 // pred_region
      _
    $region9: #{char_rnn_forward.1} parent=1 // pred_fallthru
      _
    // Predicated region
    $region10: #{char_rnn_forward.1} parent=1 // pred_check
      _
    $region11: #{char_rnn_forward.1} parent=1 // pred_check_branch
      %21 = sbr.rel (0) target = $region13
    $region12: #{char_rnn_forward.1} parent=1 // pred_region
      _
    $region13: #{char_rnn_forward.1} parent=1 // pred_fallthru
      _
    // Predicated region
    $region14: #{char_rnn_forward.1} parent=1 // pred_check
      _
    $region15: #{char_rnn_forward.1} parent=1 // pred_check_branch
      %23 = sbr.rel (0) target = $region17
    $region16: #{char_rnn_forward.1} parent=1 // pred_region
      %25 = vsyncadd [#allocation3], 0
      %s26 = sshll.u32 %s3, 4
      %s27 = int_to_ptr.hbm [resolvable:$true] %s26
      %s28 = sshll.u32 [#allocation2], 4
      %s29 = int_to_ptr.vmem [resolvable:$true] %s28
      %34 = dma.hbm_to_vmem [thread:$0]  %s27, 3072, %s29, [#allocation3], 192, 192, 12
    $region17: #{char_rnn_forward.1} parent=1 // pred_fallthru
      _
    // Predicated region
    $region18: #{char_rnn_forward.1} parent=1 // pred_check
      _
    $region19: #{char_rnn_forward.1} parent=1 // pred_check_branch
      %36 = sbr.rel (0) target = $region21
    $region20: #{char_rnn_forward.1} parent=1 // pred_region
      _
    $region21: #{char_rnn_forward.1} parent=1 // pred_fallthru
      _
    // Predicated region
    $region22: #{char_rnn_forward.1} parent=1 // pred_check
      _
    $region23: #{char_rnn_forward.1} parent=1 // pred_check_branch
      %38 = sbr.rel (0) target = $region25
    $region24: #{char_rnn_forward.1} parent=1 // pred_region
      _
    $region25: #{char_rnn_forward.1} parent=1 // pred_fallthru
      _
    // Predicated region
    $region26: #{char_rnn_forward.1} parent=1 // pred_check
      _
    $region27: #{char_rnn_forward.1} parent=1 // pred_check_branch
      %40 = sbr.rel (0) target = $region29
    $region28: #{char_rnn_forward.1} parent=1 // pred_region
      _
    $region29: #{char_rnn_forward.1} parent=1 // pred_fallthru
      _
    // Predicated region
    $region30: #{char_rnn_forward.1} parent=1 // pred_check
      _
    $region31: #{char_rnn_forward.1} parent=1 // pred_check_branch
      %42 = sbr.rel (0) target = $region33
    $region32: #{char_rnn_forward.1} parent=1 // pred_region
      _
    $region33: #{char_rnn_forward.1} parent=1 // pred_fallthru
      _
    // Predicated region
    $region34: #{char_rnn_forward.1} parent=1 // pred_check
      _
    $region35: #{char_rnn_forward.1} parent=1 // pred_check_branch
      %44 = sbr.rel (0) target = $region37
    $region36: #{char_rnn_forward.1} parent=1 // pred_region
      %46 = dma.done [#allocation3], 3072
    $region37: #{char_rnn_forward.1} parent=1 // pred_fallthru
      _
    %v48 = vld [vmem:[%s0] sm:$0xf]
    %v49 = vld [vmem:[%s0 + $0x4] sm:$0xf]
    %v50 = vld [vmem:[%s0 + $0x8] sm:$0xf]
    %v51 = vld [vmem:[%s0 + $0xc] sm:$0xf]
    %v52 = vld [vmem:[%s0 + $0x10] sm:$0xf]
    %v53 = vld [vmem:[%s0 + $0x14] sm:$0xf]
    %v54 = vld [vmem:[%s0 + $0x18] sm:$0xf]
    %v55 = vld [vmem:[%s0 + $0x1c] sm:$0xf]
    %v56 = vld [vmem:[%s2] sm:$0xff]
    %v57 = vld [vmem:[%s2 + $0x8] sm:$0xf]
    %v58 = vld [vmem:[%s2 + $0xc] sm:$0xff]
    %v59 = vld [vmem:[%s2 + $0x14] sm:$0xf]
    %v60 = vld [vmem:[%s2 + $0x18] sm:$0xff]
    %v61 = vld [vmem:[%s2 + $0x20] sm:$0xf]
    %v62 = vld [vmem:[%s2 + $0x24] sm:$0xff]
    %v63 = vld [vmem:[%s2 + $0x2c] sm:$0xf]
    %v64 = vld [vmem:[%s4] sm:$0x7]
    %v66 = vperm.slane %v64, 0
    %v67 = vperm.slane %v64, 1
    %v68 = vperm.slane %v64, 2
    %v80 = vunpack.c.l.b16 %v48
    %v81 = vunpack.c.l.b16 %v49
    %v82 = vunpack.c.l.b16 %v50
    %v83 = vunpack.c.l.b16 %v51
    %v84 = vunpack.c.l.b16 %v52
    %v85 = vunpack.c.l.b16 %v53
    %v86 = vunpack.c.l.b16 %v54
    %v87 = vunpack.c.l.b16 %v55
    %v88 = vpack.c.b16 %v81, %v80
    %v89 = vpack.c.b16 %v83, %v82
    %v90 = vpack.c.b16 %v85, %v84
    %v91 = vpack.c.b16 %v87, %v86
    %v100 = vunpack.c.l.b16 %v56
    %v101 = vunpack.c.h.b16 %v56
    %v102 = vunpack.c.l.b16 %v57
    %v103 = vunpack.c.l.b16 %v58
    %v104 = vunpack.c.h.b16 %v58
    %v105 = vunpack.c.l.b16 %v59
    %v106 = vunpack.c.l.b16 %v60
    %v107 = vunpack.c.h.b16 %v60
    %v108 = vunpack.c.l.b16 %v61
    %v109 = vunpack.c.l.b16 %v62
    %v110 = vunpack.c.h.b16 %v62
    %v111 = vunpack.c.l.b16 %v63
    %v112 = vpack.c.b16 %v103, %v100
    %v113 = vpack.c.b16 %v104, %v101
    %v114 = vpack.c.b16 %v105, %v102
    %v115 = vpack.c.b16 %v109, %v106
    %v116 = vpack.c.b16 %v110, %v107
    %v117 = vpack.c.b16 %v111, %v108
    %vm124 = vcmask 261120
    %v126 = vsel %vm124, %v88, 0
    %v129 = vsel %vm124, %v89, 0
    %v132 = vsel %vm124, %v90, 0
    %v135 = vsel %vm124, %v91, 0
    %137 = vmatpush.bf16.msra.mxu0 0
    %138 = vmatpush.bf16.msra.mxu0 0
    %139 = vmatpush.bf16.msra.mxu0 0
    %140 = vmatpush.bf16.msra.mxu0 0
    %141 = vmatpush.bf16.msra.mxu0 0
    %142 = vmatpush.bf16.msra.mxu0 0
    %143 = vmatpush.bf16.msra.mxu0 %v115
    %144 = vmatpush.bf16.msra.mxu0 %v112
    %145 = vmatmul.bf16.gmra.mxu0 %v126
    %v146 = vpop.f32.mrf.mxu0
    %v147 = vadd.f32 %v66, %v146
    %v148 = vpop.f32.mrf.mxu0
    %v149 = vadd.f32 %v66, %v148
    %150 = vmatmul.bf16.gmra.mxu0 %v129
    %v151 = vpop.f32.mrf.mxu0
    %v152 = vadd.f32 %v66, %v151
    %v153 = vpop.f32.mrf.mxu0
    %v154 = vadd.f32 %v66, %v153
    %155 = vmatmul.bf16.gmra.mxu0 %v132
    %v156 = vpop.f32.mrf.mxu0
    %v157 = vadd.f32 %v66, %v156
    %v158 = vpop.f32.mrf.mxu0
    %v159 = vadd.f32 %v66, %v158
    %160 = vmatmul.bf16.gmra.mxu0 %v135
    %v161 = vpop.f32.mrf.mxu0
    %v162 = vadd.f32 %v66, %v161
    %v163 = vpop.f32.mrf.mxu0
    %v164 = vadd.f32 %v66, %v163
    %165 = vdwg.mxu0
    %166 = vmatpush.bf16.msra.mxu0 0
    %167 = vmatpush.bf16.msra.mxu0 0
    %168 = vmatpush.bf16.msra.mxu0 0
    %169 = vmatpush.bf16.msra.mxu0 0
    %170 = vmatpush.bf16.msra.mxu0 0
    %171 = vmatpush.bf16.msra.mxu0 0
    %172 = vmatpush.bf16.msra.mxu0 %v116
    %173 = vmatpush.bf16.msra.mxu0 %v113
    %174 = vmatmul.bf16.gmra.mxu0 %v126
    %v175 = vpop.f32.mrf.mxu0
    %v176 = vadd.f32 %v67, %v175
    %v177 = vpop.f32.mrf.mxu0
    %v178 = vadd.f32 %v67, %v177
    %179 = vmatmul.bf16.gmra.mxu0 %v129
    %v180 = vpop.f32.mrf.mxu0
    %v181 = vadd.f32 %v67, %v180
    %v182 = vpop.f32.mrf.mxu0
    %v183 = vadd.f32 %v67, %v182
    %184 = vmatmul.bf16.gmra.mxu0 %v132
    %v185 = vpop.f32.mrf.mxu0
    %v186 = vadd.f32 %v67, %v185
    %v187 = vpop.f32.mrf.mxu0
    %v188 = vadd.f32 %v67, %v187
    %189 = vmatmul.bf16.gmra.mxu0 %v135
    %v190 = vpop.f32.mrf.mxu0
    %v191 = vadd.f32 %v67, %v190
    %v192 = vpop.f32.mrf.mxu0
    %v193 = vadd.f32 %v67, %v192
    %194 = vdwg.mxu0
    %195 = vmatpush.bf16.msra.mxu0 0
    %196 = vmatpush.bf16.msra.mxu0 0
    %197 = vmatpush.bf16.msra.mxu0 0
    %198 = vmatpush.bf16.msra.mxu0 0
    %199 = vmatpush.bf16.msra.mxu0 0
    %200 = vmatpush.bf16.msra.mxu0 0
    %201 = vmatpush.bf16.msra.mxu0 %v117
    %202 = vmatpush.bf16.msra.mxu0 %v114
    %203 = vmatmul.bf16.gmra.mxu0 %v126
    %v204 = vpop.f32.mrf.mxu0
    %v205 = vadd.f32 %v68, %v204
    %v206 = vpop.f32.mrf.mxu0
    %v207 = vadd.f32 %v68, %v206
    %208 = vmatmul.bf16.gmra.mxu0 %v129
    %v209 = vpop.f32.mrf.mxu0
    %v210 = vadd.f32 %v68, %v209
    %v211 = vpop.f32.mrf.mxu0
    %v212 = vadd.f32 %v68, %v211
    %213 = vmatmul.bf16.gmra.mxu0 %v132
    %v214 = vpop.f32.mrf.mxu0
    %v215 = vadd.f32 %v68, %v214
    %v216 = vpop.f32.mrf.mxu0
    %v217 = vadd.f32 %v68, %v216
    %218 = vmatmul.bf16.gmra.mxu0 %v135
    %v219 = vpop.f32.mrf.mxu0
    %v220 = vadd.f32 %v68, %v219
    %v221 = vpop.f32.mrf.mxu0
    %v222 = vadd.f32 %v68, %v221
    %223 = vdwg.mxu0
    %v224 = vld [vmem:[#allocation2] sm:$0xff]
    %v225 = vld [vmem:[#allocation2 + $0x8] sm:$0xf]
    %v226 = vld [vmem:[#allocation2 + $0xc] sm:$0xff]
    %v227 = vld [vmem:[#allocation2 + $0x14] sm:$0xf]
    %v228 = vld [vmem:[#allocation2 + $0x18] sm:$0xff]
    %v229 = vld [vmem:[#allocation2 + $0x20] sm:$0xf]
    %v230 = vld [vmem:[#allocation2 + $0x24] sm:$0xff]
    %v231 = vld [vmem:[#allocation2 + $0x2c] sm:$0xf]
    %v232 = vld [vmem:[#allocation2 + $0x30] sm:$0xff]
    %v233 = vld [vmem:[#allocation2 + $0x38] sm:$0xf]
    %v234 = vld [vmem:[#allocation2 + $0x3c] sm:$0xff]
    %v235 = vld [vmem:[#allocation2 + $0x44] sm:$0xf]
    %v236 = vld [vmem:[#allocation2 + $0x48] sm:$0xff]
    %v237 = vld [vmem:[#allocation2 + $0x50] sm:$0xf]
    %v238 = vld [vmem:[#allocation2 + $0x54] sm:$0xff]
    %v239 = vld [vmem:[#allocation2 + $0x5c] sm:$0xf]
    %v240 = vld [vmem:[#allocation2 + $0x60] sm:$0xff]
    %v241 = vld [vmem:[#allocation2 + $0x68] sm:$0xf]
    %v242 = vld [vmem:[#allocation2 + $0x6c] sm:$0xff]
    %v243 = vld [vmem:[#allocation2 + $0x74] sm:$0xf]
    %v244 = vld [vmem:[#allocation2 + $0x78] sm:$0xff]
    %v245 = vld [vmem:[#allocation2 + $0x80] sm:$0xf]
    %v246 = vld [vmem:[#allocation2 + $0x84] sm:$0xff]
    %v247 = vld [vmem:[#allocation2 + $0x8c] sm:$0xf]
    %v248 = vld [vmem:[#allocation2 + $0x90] sm:$0xff]
    %v249 = vld [vmem:[#allocation2 + $0x98] sm:$0xf]
    %v250 = vld [vmem:[#allocation2 + $0x9c] sm:$0xff]
    %v251 = vld [vmem:[#allocation2 + $0xa4] sm:$0xf]
    %v252 = vld [vmem:[#allocation2 + $0xa8] sm:$0xff]
    %v253 = vld [vmem:[#allocation2 + $0xb0] sm:$0xf]
    %v254 = vld [vmem:[#allocation2 + $0xb4] sm:$0xff]
    %v255 = vld [vmem:[#allocation2 + $0xbc] sm:$0xf]
    %v256 = vld [vmem:[%s5] sm:$0x1]
    %v257 = vld [vmem:[%s1] sm:$0xff]
    %v258 = vpack.c.bf16 %v257, %v257
    %v291 = vunpack.c.l.b16 %v224
    %v292 = vunpack.c.h.b16 %v224
    %v293 = vunpack.c.l.b16 %v225
    %v294 = vunpack.c.l.b16 %v226
    %v295 = vunpack.c.h.b16 %v226
    %v296 = vunpack.c.l.b16 %v227
    %v297 = vunpack.c.l.b16 %v228
    %v298 = vunpack.c.h.b16 %v228
    %v299 = vunpack.c.l.b16 %v229
    %v300 = vunpack.c.l.b16 %v230
    %v301 = vunpack.c.h.b16 %v230
    %v302 = vunpack.c.l.b16 %v231
    %v303 = vunpack.c.l.b16 %v232
    %v304 = vunpack.c.h.b16 %v232
    %v305 = vunpack.c.l.b16 %v233
    %v306 = vunpack.c.l.b16 %v234
    %v307 = vunpack.c.h.b16 %v234
    %v308 = vunpack.c.l.b16 %v235
    %v309 = vunpack.c.l.b16 %v236
    %v310 = vunpack.c.h.b16 %v236
    %v311 = vunpack.c.l.b16 %v237
    %v312 = vunpack.c.l.b16 %v238
    %v313 = vunpack.c.h.b16 %v238
    %v314 = vunpack.c.l.b16 %v239
    %v315 = vunpack.c.l.b16 %v240
    %v316 = vunpack.c.h.b16 %v240
    %v317 = vunpack.c.l.b16 %v241
    %v318 = vunpack.c.l.b16 %v242
    %v319 = vunpack.c.h.b16 %v242
    %v320 = vunpack.c.l.b16 %v243
    %v321 = vunpack.c.l.b16 %v244
    %v322 = vunpack.c.h.b16 %v244
    %v323 = vunpack.c.l.b16 %v245
    %v324 = vunpack.c.l.b16 %v246
    %v325 = vunpack.c.h.b16 %v246
    %v326 = vunpack.c.l.b16 %v247
    %v327 = vunpack.c.l.b16 %v248
    %v328 = vunpack.c.h.b16 %v248
    %v329 = vunpack.c.l.b16 %v249
    %v330 = vunpack.c.l.b16 %v250
    %v331 = vunpack.c.h.b16 %v250
    %v332 = vunpack.c.l.b16 %v251
    %v333 = vunpack.c.l.b16 %v252
    %v334 = vunpack.c.h.b16 %v252
    %v335 = vunpack.c.l.b16 %v253
    %v336 = vunpack.c.l.b16 %v254
    %v337 = vunpack.c.h.b16 %v254
    %v338 = vunpack.c.l.b16 %v255
    %v339 = vpack.c.b16 %v294, %v291
    %v340 = vpack.c.b16 %v295, %v292
    %v341 = vpack.c.b16 %v296, %v293
    %v342 = vpack.c.b16 %v300, %v297
    %v343 = vpack.c.b16 %v301, %v298
    %v344 = vpack.c.b16 %v302, %v299
    %v345 = vpack.c.b16 %v306, %v303
    %v346 = vpack.c.b16 %v307, %v304
    %v347 = vpack.c.b16 %v308, %v305
    %v348 = vpack.c.b16 %v312, %v309
    %v349 = vpack.c.b16 %v313, %v310
    %v350 = vpack.c.b16 %v314, %v311
    %v351 = vpack.c.b16 %v318, %v315
    %v352 = vpack.c.b16 %v319, %v316
    %v353 = vpack.c.b16 %v320, %v317
    %v354 = vpack.c.b16 %v324, %v321
    %v355 = vpack.c.b16 %v325, %v322
    %v356 = vpack.c.b16 %v326, %v323
    %v357 = vpack.c.b16 %v330, %v327
    %v358 = vpack.c.b16 %v331, %v328
    %v359 = vpack.c.b16 %v332, %v329
    %v360 = vpack.c.b16 %v336, %v333
    %v361 = vpack.c.b16 %v337, %v334
    %v362 = vpack.c.b16 %v338, %v335
    %387 = vmatpush.bf16.msra.mxu0 %v360
    %388 = vmatpush.bf16.msra.mxu0 %v357
    %389 = vmatpush.bf16.msra.mxu0 %v354
    %390 = vmatpush.bf16.msra.mxu0 %v351
    %391 = vmatpush.bf16.msra.mxu0 %v348
    %392 = vmatpush.bf16.msra.mxu0 %v345
    %393 = vmatpush.bf16.msra.mxu0 %v342
    %394 = vmatpush.bf16.msra.mxu0 %v339
    %395 = vmatmul.bf16.gmra.mxu0 %v258
    %v396 = vpop.f32.mrf.mxu0
    %v397 = vadd.f32 0.0, %v396
    %v398 = vpop.f32.mrf.mxu0
    %399 = vdwg.mxu0
    %400 = vmatpush.bf16.msra.mxu0 %v361
    %401 = vmatpush.bf16.msra.mxu0 %v358
    %402 = vmatpush.bf16.msra.mxu0 %v355
    %403 = vmatpush.bf16.msra.mxu0 %v352
    %404 = vmatpush.bf16.msra.mxu0 %v349
    %405 = vmatpush.bf16.msra.mxu0 %v346
    %406 = vmatpush.bf16.msra.mxu0 %v343
    %407 = vmatpush.bf16.msra.mxu0 %v340
    %408 = vmatmul.bf16.gmra.mxu0 %v258
    %v409 = vpop.f32.mrf.mxu0
    %v410 = vadd.f32 0.0, %v409
    %v411 = vpop.f32.mrf.mxu0
    %412 = vdwg.mxu0
    %413 = vmatpush.bf16.msra.mxu0 %v362
    %414 = vmatpush.bf16.msra.mxu0 %v359
    %415 = vmatpush.bf16.msra.mxu0 %v356
    %416 = vmatpush.bf16.msra.mxu0 %v353
    %417 = vmatpush.bf16.msra.mxu0 %v350
    %418 = vmatpush.bf16.msra.mxu0 %v347
    %419 = vmatpush.bf16.msra.mxu0 %v344
    %420 = vmatpush.bf16.msra.mxu0 %v341
    %421 = vmatmul.bf16.gmra.mxu0 %v258
    %v422 = vpop.f32.mrf.mxu0
    %v423 = vadd.f32 0.0, %v422
    %v424 = vpop.f32.mrf.mxu0
    %425 = vdwg.mxu0
    %v426 = vadd.f32 %v147, %v397
    %v427 = vxor.u32 %v426, 2147483648
    %v428 = vmul.f32 %v427, 1.442695
    %v429 = vpow.pop %v428
    %v430 = vadd.f32 %v429, 1.0
    %v431 = vrcp.pop %v430
    %v432 = vmul.f32 %v430, %v431
    %v433 = vsub.f32 1.0, %v432
    %v434 = vmul.f32 %v431, %v433
    %v435 = vadd.f32 %v431, %v434
    %vm436 = vweird.f32 %v430
    %vm437 = vweird.f32 %v431
    %vm438 = vmor %vm436, %vm437
    %v439 = vsel %vm438, %v431, %v435
    %v440 = vand.u32 2147483647, %v430
    %vm441 = vcmp.eq.f32.partialorder %v440, 8.507059e+37
    %v442 = vand.u32 %v430, 2147483648
    %v443 = vor.u32 1.1754944e-38, %v442
    %v444 = vsel %vm441, %v443, %v439
    %v445 = vmul.f32 1.0, %v444
    %v446 = vadd.f32 %v176, %v410
    %v447 = vxor.u32 %v446, 2147483648
    %v448 = vmul.f32 %v447, 1.442695
    %v449 = vpow.pop %v448
    %v450 = vadd.f32 %v449, 1.0
    %v451 = vrcp.pop %v450
    %v452 = vmul.f32 %v450, %v451
    %v453 = vsub.f32 1.0, %v452
    %v454 = vmul.f32 %v451, %v453
    %v455 = vadd.f32 %v451, %v454
    %vm456 = vweird.f32 %v450
    %vm457 = vweird.f32 %v451
    %vm458 = vmor %vm456, %vm457
    %v459 = vsel %vm458, %v451, %v455
    %v460 = vand.u32 2147483647, %v450
    %vm461 = vcmp.eq.f32.partialorder %v460, 8.507059e+37
    %v462 = vand.u32 %v450, 2147483648
    %v463 = vor.u32 1.1754944e-38, %v462
    %v464 = vsel %vm461, %v463, %v459
    %v465 = vmul.f32 1.0, %v464
    %v467 = vperm.slane %v256, 0
    %v469 = vadd.f32 %v423, %v467
    %v470 = vmul.f32 %v445, %v469
    %v471 = vadd.f32 %v205, %v470
    %v472 = vtanh.pop %v471
    %v473 = vsub.f32 %v257, %v472
    %v474 = vmul.f32 %v465, %v473
    %v475 = vadd.f32 %v472, %v474
    %476 = vst [vmem:[%s8] sm:$0xff] %v475
    %v477 = vpack.c.bf16 %v475, %v475
    %478 = vmatpush.bf16.msra.mxu0 %v360
    %479 = vmatpush.bf16.msra.mxu0 %v357
    %480 = vmatpush.bf16.msra.mxu0 %v354
    %481 = vmatpush.bf16.msra.mxu0 %v351
    %482 = vmatpush.bf16.msra.mxu0 %v348
    %483 = vmatpush.bf16.msra.mxu0 %v345
    %484 = vmatpush.bf16.msra.mxu0 %v342
    %485 = vmatpush.bf16.msra.mxu0 %v339
    %486 = vmatmul.bf16.gmra.mxu0 %v477
    %v487 = vpop.f32.mrf.mxu0
    %v488 = vadd.f32 0.0, %v487
    %v489 = vpop.f32.mrf.mxu0
    %490 = vdwg.mxu0
    %491 = vmatpush.bf16.msra.mxu0 %v361
    %492 = vmatpush.bf16.msra.mxu0 %v358
    %493 = vmatpush.bf16.msra.mxu0 %v355
    %494 = vmatpush.bf16.msra.mxu0 %v352
    %495 = vmatpush.bf16.msra.mxu0 %v349
    %496 = vmatpush.bf16.msra.mxu0 %v346
    %497 = vmatpush.bf16.msra.mxu0 %v343
    %498 = vmatpush.bf16.msra.mxu0 %v340
    %499 = vmatmul.bf16.gmra.mxu0 %v477
    %v500 = vpop.f32.mrf.mxu0
    %v501 = vadd.f32 0.0, %v500
    %v502 = vpop.f32.mrf.mxu0
    %503 = vdwg.mxu0
    %504 = vmatpush.bf16.msra.mxu0 %v362
    %505 = vmatpush.bf16.msra.mxu0 %v359
    %506 = vmatpush.bf16.msra.mxu0 %v356
    %507 = vmatpush.bf16.msra.mxu0 %v353
    %508 = vmatpush.bf16.msra.mxu0 %v350
    %509 = vmatpush.bf16.msra.mxu0 %v347
    %510 = vmatpush.bf16.msra.mxu0 %v344
    %511 = vmatpush.bf16.msra.mxu0 %v341
    %512 = vmatmul.bf16.gmra.mxu0 %v477
    %v513 = vpop.f32.mrf.mxu0
    %v514 = vadd.f32 0.0, %v513
    %v515 = vpop.f32.mrf.mxu0
    %516 = vdwg.mxu0
    %v517 = vadd.f32 %v149, %v488
    %v518 = vxor.u32 %v517, 2147483648
    %v519 = vmul.f32 %v518, 1.442695
    %v520 = vpow.pop %v519
    %v521 = vadd.f32 %v520, 1.0
    %v522 = vrcp.pop %v521
    %v523 = vmul.f32 %v521, %v522
    %v524 = vsub.f32 1.0, %v523
    %v525 = vmul.f32 %v522, %v524
    %v526 = vadd.f32 %v522, %v525
    %vm527 = vweird.f32 %v521
    %vm528 = vweird.f32 %v522
    %vm529 = vmor %vm527, %vm528
    %v530 = vsel %vm529, %v522, %v526
    %v531 = vand.u32 2147483647, %v521
    %vm532 = vcmp.eq.f32.partialorder %v531, 8.507059e+37
    %v533 = vand.u32 %v521, 2147483648
    %v534 = vor.u32 1.1754944e-38, %v533
    %v535 = vsel %vm532, %v534, %v530
    %v536 = vmul.f32 1.0, %v535
    %v537 = vadd.f32 %v178, %v501
    %v538 = vxor.u32 %v537, 2147483648
    %v539 = vmul.f32 %v538, 1.442695
    %v540 = vpow.pop %v539
    %v541 = vadd.f32 %v540, 1.0
    %v542 = vrcp.pop %v541
    %v543 = vmul.f32 %v541, %v542
    %v544 = vsub.f32 1.0, %v543
    %v545 = vmul.f32 %v542, %v544
    %v546 = vadd.f32 %v542, %v545
    %vm547 = vweird.f32 %v541
    %vm548 = vweird.f32 %v542
    %vm549 = vmor %vm547, %vm548
    %v550 = vsel %vm549, %v542, %v546
    %v551 = vand.u32 2147483647, %v541
    %vm552 = vcmp.eq.f32.partialorder %v551, 8.507059e+37
    %v553 = vand.u32 %v541, 2147483648
    %v554 = vor.u32 1.1754944e-38, %v553
    %v555 = vsel %vm552, %v554, %v550
    %v556 = vmul.f32 1.0, %v555
    %v557 = vadd.f32 %v514, %v467
    %v558 = vmul.f32 %v536, %v557
    %v559 = vadd.f32 %v207, %v558
    %v560 = vtanh.pop %v559
    %v561 = vsub.f32 %v475, %v560
    %v562 = vmul.f32 %v556, %v561
    %v563 = vadd.f32 %v560, %v562
    %s564 = scalar_lea.vmem %s8, 8
    %565 = vst [vmem:[%s564] sm:$0xff] %v563
    %v566 = vpack.c.bf16 %v563, %v563
    %567 = vmatpush.bf16.msra.mxu0 %v360
    %568 = vmatpush.bf16.msra.mxu0 %v357
    %569 = vmatpush.bf16.msra.mxu0 %v354
    %570 = vmatpush.bf16.msra.mxu0 %v351
    %571 = vmatpush.bf16.msra.mxu0 %v348
    %572 = vmatpush.bf16.msra.mxu0 %v345
    %573 = vmatpush.bf16.msra.mxu0 %v342
    %574 = vmatpush.bf16.msra.mxu0 %v339
    %575 = vmatmul.bf16.gmra.mxu0 %v566
    %v576 = vpop.f32.mrf.mxu0
    %v577 = vadd.f32 0.0, %v576
    %v578 = vpop.f32.mrf.mxu0
    %579 = vdwg.mxu0
    %580 = vmatpush.bf16.msra.mxu0 %v361
    %581 = vmatpush.bf16.msra.mxu0 %v358
    %582 = vmatpush.bf16.msra.mxu0 %v355
    %583 = vmatpush.bf16.msra.mxu0 %v352
    %584 = vmatpush.bf16.msra.mxu0 %v349
    %585 = vmatpush.bf16.msra.mxu0 %v346
    %586 = vmatpush.bf16.msra.mxu0 %v343
    %587 = vmatpush.bf16.msra.mxu0 %v340
    %588 = vmatmul.bf16.gmra.mxu0 %v566
    %v589 = vpop.f32.mrf.mxu0
    %v590 = vadd.f32 0.0, %v589
    %v591 = vpop.f32.mrf.mxu0
    %592 = vdwg.mxu0
    %593 = vmatpush.bf16.msra.mxu0 %v362
    %594 = vmatpush.bf16.msra.mxu0 %v359
    %595 = vmatpush.bf16.msra.mxu0 %v356
    %596 = vmatpush.bf16.msra.mxu0 %v353
    %597 = vmatpush.bf16.msra.mxu0 %v350
    %598 = vmatpush.bf16.msra.mxu0 %v347
    %599 = vmatpush.bf16.msra.mxu0 %v344
    %600 = vmatpush.bf16.msra.mxu0 %v341
    %601 = vmatmul.bf16.gmra.mxu0 %v566
    %v602 = vpop.f32.mrf.mxu0
    %v603 = vadd.f32 0.0, %v602
    %v604 = vpop.f32.mrf.mxu0
    %605 = vdwg.mxu0
    %v606 = vadd.f32 %v152, %v577
    %v607 = vxor.u32 %v606, 2147483648
    %v608 = vmul.f32 %v607, 1.442695
    %v609 = vpow.pop %v608
    %v610 = vadd.f32 %v609, 1.0
    %v611 = vrcp.pop %v610
    %v612 = vmul.f32 %v610, %v611
    %v613 = vsub.f32 1.0, %v612
    %v614 = vmul.f32 %v611, %v613
    %v615 = vadd.f32 %v611, %v614
    %vm616 = vweird.f32 %v610
    %vm617 = vweird.f32 %v611
    %vm618 = vmor %vm616, %vm617
    %v619 = vsel %vm618, %v611, %v615
    %v620 = vand.u32 2147483647, %v610
    %vm621 = vcmp.eq.f32.partialorder %v620, 8.507059e+37
    %v622 = vand.u32 %v610, 2147483648
    %v623 = vor.u32 1.1754944e-38, %v622
    %v624 = vsel %vm621, %v623, %v619
    %v625 = vmul.f32 1.0, %v624
    %v626 = vadd.f32 %v181, %v590
    %v627 = vxor.u32 %v626, 2147483648
    %v628 = vmul.f32 %v627, 1.442695
    %v629 = vpow.pop %v628
    %v630 = vadd.f32 %v629, 1.0
    %v631 = vrcp.pop %v630
    %v632 = vmul.f32 %v630, %v631
    %v633 = vsub.f32 1.0, %v632
    %v634 = vmul.f32 %v631, %v633
    %v635 = vadd.f32 %v631, %v634
    %vm636 = vweird.f32 %v630
    %vm637 = vweird.f32 %v631
    %vm638 = vmor %vm636, %vm637
    %v639 = vsel %vm638, %v631, %v635
    %v640 = vand.u32 2147483647, %v630
    %vm641 = vcmp.eq.f32.partialorder %v640, 8.507059e+37
    %v642 = vand.u32 %v630, 2147483648
    %v643 = vor.u32 1.1754944e-38, %v642
    %v644 = vsel %vm641, %v643, %v639
    %v645 = vmul.f32 1.0, %v644
    %v646 = vadd.f32 %v603, %v467
    %v647 = vmul.f32 %v625, %v646
    %v648 = vadd.f32 %v210, %v647
    %v649 = vtanh.pop %v648
    %v650 = vsub.f32 %v563, %v649
    %v651 = vmul.f32 %v645, %v650
    %v652 = vadd.f32 %v649, %v651
    %s653 = scalar_lea.vmem %s8, 16
    %654 = vst [vmem:[%s653] sm:$0xff] %v652
    %v655 = vpack.c.bf16 %v652, %v652
    %656 = vmatpush.bf16.msra.mxu0 %v360
    %657 = vmatpush.bf16.msra.mxu0 %v357
    %658 = vmatpush.bf16.msra.mxu0 %v354
    %659 = vmatpush.bf16.msra.mxu0 %v351
    %660 = vmatpush.bf16.msra.mxu0 %v348
    %661 = vmatpush.bf16.msra.mxu0 %v345
    %662 = vmatpush.bf16.msra.mxu0 %v342
    %663 = vmatpush.bf16.msra.mxu0 %v339
    %664 = vmatmul.bf16.gmra.mxu0 %v655
    %v665 = vpop.f32.mrf.mxu0
    %v666 = vadd.f32 0.0, %v665
    %v667 = vpop.f32.mrf.mxu0
    %668 = vdwg.mxu0
    %669 = vmatpush.bf16.msra.mxu0 %v361
    %670 = vmatpush.bf16.msra.mxu0 %v358
    %671 = vmatpush.bf16.msra.mxu0 %v355
    %672 = vmatpush.bf16.msra.mxu0 %v352
    %673 = vmatpush.bf16.msra.mxu0 %v349
    %674 = vmatpush.bf16.msra.mxu0 %v346
    %675 = vmatpush.bf16.msra.mxu0 %v343
    %676 = vmatpush.bf16.msra.mxu0 %v340
    %677 = vmatmul.bf16.gmra.mxu0 %v655
    %v678 = vpop.f32.mrf.mxu0
    %v679 = vadd.f32 0.0, %v678
    %v680 = vpop.f32.mrf.mxu0
    %681 = vdwg.mxu0
    %682 = vmatpush.bf16.msra.mxu0 %v362
    %683 = vmatpush.bf16.msra.mxu0 %v359
    %684 = vmatpush.bf16.msra.mxu0 %v356
    %685 = vmatpush.bf16.msra.mxu0 %v353
    %686 = vmatpush.bf16.msra.mxu0 %v350
    %687 = vmatpush.bf16.msra.mxu0 %v347
    %688 = vmatpush.bf16.msra.mxu0 %v344
    %689 = vmatpush.bf16.msra.mxu0 %v341
    %690 = vmatmul.bf16.gmra.mxu0 %v655
    %v691 = vpop.f32.mrf.mxu0
    %v692 = vadd.f32 0.0, %v691
    %v693 = vpop.f32.mrf.mxu0
    %694 = vdwg.mxu0
    %v695 = vadd.f32 %v154, %v666
    %v696 = vxor.u32 %v695, 2147483648
    %v697 = vmul.f32 %v696, 1.442695
    %v698 = vpow.pop %v697
    %v699 = vadd.f32 %v698, 1.0
    %v700 = vrcp.pop %v699
    %v701 = vmul.f32 %v699, %v700
    %v702 = vsub.f32 1.0, %v701
    %v703 = vmul.f32 %v700, %v702
    %v704 = vadd.f32 %v700, %v703
    %vm705 = vweird.f32 %v699
    %vm706 = vweird.f32 %v700
    %vm707 = vmor %vm705, %vm706
    %v708 = vsel %vm707, %v700, %v704
    %v709 = vand.u32 2147483647, %v699
    %vm710 = vcmp.eq.f32.partialorder %v709, 8.507059e+37
    %v711 = vand.u32 %v699, 2147483648
    %v712 = vor.u32 1.1754944e-38, %v711
    %v713 = vsel %vm710, %v712, %v708
    %v714 = vmul.f32 1.0, %v713
    %v715 = vadd.f32 %v183, %v679
    %v716 = vxor.u32 %v715, 2147483648
    %v717 = vmul.f32 %v716, 1.442695
    %v718 = vpow.pop %v717
    %v719 = vadd.f32 %v718, 1.0
    %v720 = vrcp.pop %v719
    %v721 = vmul.f32 %v719, %v720
    %v722 = vsub.f32 1.0, %v721
    %v723 = vmul.f32 %v720, %v722
    %v724 = vadd.f32 %v720, %v723
    %vm725 = vweird.f32 %v719
    %vm726 = vweird.f32 %v720
    %vm727 = vmor %vm725, %vm726
    %v728 = vsel %vm727, %v720, %v724
    %v729 = vand.u32 2147483647, %v719
    %vm730 = vcmp.eq.f32.partialorder %v729, 8.507059e+37
    %v731 = vand.u32 %v719, 2147483648
    %v732 = vor.u32 1.1754944e-38, %v731
    %v733 = vsel %vm730, %v732, %v728
    %v734 = vmul.f32 1.0, %v733
    %v735 = vadd.f32 %v692, %v467
    %v736 = vmul.f32 %v714, %v735
    %v737 = vadd.f32 %v212, %v736
    %v738 = vtanh.pop %v737
    %v739 = vsub.f32 %v652, %v738
    %v740 = vmul.f32 %v734, %v739
    %v741 = vadd.f32 %v738, %v740
    %s742 = scalar_lea.vmem %s8, 24
    %743 = vst [vmem:[%s742] sm:$0xff] %v741
    %v744 = vpack.c.bf16 %v741, %v741
    %745 = vmatpush.bf16.msra.mxu0 %v360
    %746 = vmatpush.bf16.msra.mxu0 %v357
    %747 = vmatpush.bf16.msra.mxu0 %v354
    %748 = vmatpush.bf16.msra.mxu0 %v351
    %749 = vmatpush.bf16.msra.mxu0 %v348
    %750 = vmatpush.bf16.msra.mxu0 %v345
    %751 = vmatpush.bf16.msra.mxu0 %v342
    %752 = vmatpush.bf16.msra.mxu0 %v339
    %753 = vmatmul.bf16.gmra.mxu0 %v744
    %v754 = vpop.f32.mrf.mxu0
    %v755 = vadd.f32 0.0, %v754
    %v756 = vpop.f32.mrf.mxu0
    %757 = vdwg.mxu0
    %758 = vmatpush.bf16.msra.mxu0 %v361
    %759 = vmatpush.bf16.msra.mxu0 %v358
    %760 = vmatpush.bf16.msra.mxu0 %v355
    %761 = vmatpush.bf16.msra.mxu0 %v352
    %762 = vmatpush.bf16.msra.mxu0 %v349
    %763 = vmatpush.bf16.msra.mxu0 %v346
    %764 = vmatpush.bf16.msra.mxu0 %v343
    %765 = vmatpush.bf16.msra.mxu0 %v340
    %766 = vmatmul.bf16.gmra.mxu0 %v744
    %v767 = vpop.f32.mrf.mxu0
    %v768 = vadd.f32 0.0, %v767
    %v769 = vpop.f32.mrf.mxu0
    %770 = vdwg.mxu0
    %771 = vmatpush.bf16.msra.mxu0 %v362
    %772 = vmatpush.bf16.msra.mxu0 %v359
    %773 = vmatpush.bf16.msra.mxu0 %v356
    %774 = vmatpush.bf16.msra.mxu0 %v353
    %775 = vmatpush.bf16.msra.mxu0 %v350
    %776 = vmatpush.bf16.msra.mxu0 %v347
    %777 = vmatpush.bf16.msra.mxu0 %v344
    %778 = vmatpush.bf16.msra.mxu0 %v341
    %779 = vmatmul.bf16.gmra.mxu0 %v744
    %v780 = vpop.f32.mrf.mxu0
    %v781 = vadd.f32 0.0, %v780
    %v782 = vpop.f32.mrf.mxu0
    %783 = vdwg.mxu0
    %v784 = vadd.f32 %v157, %v755
    %v785 = vxor.u32 %v784, 2147483648
    %v786 = vmul.f32 %v785, 1.442695
    %v787 = vpow.pop %v786
    %v788 = vadd.f32 %v787, 1.0
    %v789 = vrcp.pop %v788
    %v790 = vmul.f32 %v788, %v789
    %v791 = vsub.f32 1.0, %v790
    %v792 = vmul.f32 %v789, %v791
    %v793 = vadd.f32 %v789, %v792
    %vm794 = vweird.f32 %v788
    %vm795 = vweird.f32 %v789
    %vm796 = vmor %vm794, %vm795
    %v797 = vsel %vm796, %v789, %v793
    %v798 = vand.u32 2147483647, %v788
    %vm799 = vcmp.eq.f32.partialorder %v798, 8.507059e+37
    %v800 = vand.u32 %v788, 2147483648
    %v801 = vor.u32 1.1754944e-38, %v800
    %v802 = vsel %vm799, %v801, %v797
    %v803 = vmul.f32 1.0, %v802
    %v804 = vadd.f32 %v186, %v768
    %v805 = vxor.u32 %v804, 2147483648
    %v806 = vmul.f32 %v805, 1.442695
    %v807 = vpow.pop %v806
    %v808 = vadd.f32 %v807, 1.0
    %v809 = vrcp.pop %v808
    %v810 = vmul.f32 %v808, %v809
    %v811 = vsub.f32 1.0, %v810
    %v812 = vmul.f32 %v809, %v811
    %v813 = vadd.f32 %v809, %v812
    %vm814 = vweird.f32 %v808
    %vm815 = vweird.f32 %v809
    %vm816 = vmor %vm814, %vm815
    %v817 = vsel %vm816, %v809, %v813
    %v818 = vand.u32 2147483647, %v808
    %vm819 = vcmp.eq.f32.partialorder %v818, 8.507059e+37
    %v820 = vand.u32 %v808, 2147483648
    %v821 = vor.u32 1.1754944e-38, %v820
    %v822 = vsel %vm819, %v821, %v817
    %v823 = vmul.f32 1.0, %v822
    %v824 = vadd.f32 %v781, %v467
    %v825 = vmul.f32 %v803, %v824
    %v826 = vadd.f32 %v215, %v825
    %v827 = vtanh.pop %v826
    %v828 = vsub.f32 %v741, %v827
    %v829 = vmul.f32 %v823, %v828
    %v830 = vadd.f32 %v827, %v829
    %s831 = scalar_lea.vmem %s8, 32
    %832 = vst [vmem:[%s831] sm:$0xff] %v830
    %v833 = vpack.c.bf16 %v830, %v830
    %834 = vmatpush.bf16.msra.mxu0 %v360
    %835 = vmatpush.bf16.msra.mxu0 %v357
    %836 = vmatpush.bf16.msra.mxu0 %v354
    %837 = vmatpush.bf16.msra.mxu0 %v351
    %838 = vmatpush.bf16.msra.mxu0 %v348
    %839 = vmatpush.bf16.msra.mxu0 %v345
    %840 = vmatpush.bf16.msra.mxu0 %v342
    %841 = vmatpush.bf16.msra.mxu0 %v339
    %842 = vmatmul.bf16.gmra.mxu0 %v833
    %v843 = vpop.f32.mrf.mxu0
    %v844 = vadd.f32 0.0, %v843
    %v845 = vpop.f32.mrf.mxu0
    %846 = vdwg.mxu0
    %847 = vmatpush.bf16.msra.mxu0 %v361
    %848 = vmatpush.bf16.msra.mxu0 %v358
    %849 = vmatpush.bf16.msra.mxu0 %v355
    %850 = vmatpush.bf16.msra.mxu0 %v352
    %851 = vmatpush.bf16.msra.mxu0 %v349
    %852 = vmatpush.bf16.msra.mxu0 %v346
    %853 = vmatpush.bf16.msra.mxu0 %v343
    %854 = vmatpush.bf16.msra.mxu0 %v340
    %855 = vmatmul.bf16.gmra.mxu0 %v833
    %v856 = vpop.f32.mrf.mxu0
    %v857 = vadd.f32 0.0, %v856
    %v858 = vpop.f32.mrf.mxu0
    %859 = vdwg.mxu0
    %860 = vmatpush.bf16.msra.mxu0 %v362
    %861 = vmatpush.bf16.msra.mxu0 %v359
    %862 = vmatpush.bf16.msra.mxu0 %v356
    %863 = vmatpush.bf16.msra.mxu0 %v353
    %864 = vmatpush.bf16.msra.mxu0 %v350
    %865 = vmatpush.bf16.msra.mxu0 %v347
    %866 = vmatpush.bf16.msra.mxu0 %v344
    %867 = vmatpush.bf16.msra.mxu0 %v341
    %868 = vmatmul.bf16.gmra.mxu0 %v833
    %v869 = vpop.f32.mrf.mxu0
    %v870 = vadd.f32 0.0, %v869
    %v871 = vpop.f32.mrf.mxu0
    %872 = vdwg.mxu0
    %v873 = vadd.f32 %v159, %v844
    %v874 = vxor.u32 %v873, 2147483648
    %v875 = vmul.f32 %v874, 1.442695
    %v876 = vpow.pop %v875
    %v877 = vadd.f32 %v876, 1.0
    %v878 = vrcp.pop %v877
    %v879 = vmul.f32 %v877, %v878
    %v880 = vsub.f32 1.0, %v879
    %v881 = vmul.f32 %v878, %v880
    %v882 = vadd.f32 %v878, %v881
    %vm883 = vweird.f32 %v877
    %vm884 = vweird.f32 %v878
    %vm885 = vmor %vm883, %vm884
    %v886 = vsel %vm885, %v878, %v882
    %v887 = vand.u32 2147483647, %v877
    %vm888 = vcmp.eq.f32.partialorder %v887, 8.507059e+37
    %v889 = vand.u32 %v877, 2147483648
    %v890 = vor.u32 1.1754944e-38, %v889
    %v891 = vsel %vm888, %v890, %v886
    %v892 = vmul.f32 1.0, %v891
    %v893 = vadd.f32 %v188, %v857
    %v894 = vxor.u32 %v893, 2147483648
    %v895 = vmul.f32 %v894, 1.442695
    %v896 = vpow.pop %v895
    %v897 = vadd.f32 %v896, 1.0
    %v898 = vrcp.pop %v897
    %v899 = vmul.f32 %v897, %v898
    %v900 = vsub.f32 1.0, %v899
    %v901 = vmul.f32 %v898, %v900
    %v902 = vadd.f32 %v898, %v901
    %vm903 = vweird.f32 %v897
    %vm904 = vweird.f32 %v898
    %vm905 = vmor %vm903, %vm904
    %v906 = vsel %vm905, %v898, %v902
    %v907 = vand.u32 2147483647, %v897
    %vm908 = vcmp.eq.f32.partialorder %v907, 8.507059e+37
    %v909 = vand.u32 %v897, 2147483648
    %v910 = vor.u32 1.1754944e-38, %v909
    %v911 = vsel %vm908, %v910, %v906
    %v912 = vmul.f32 1.0, %v911
    %v913 = vadd.f32 %v870, %v467
    %v914 = vmul.f32 %v892, %v913
    %v915 = vadd.f32 %v217, %v914
    %v916 = vtanh.pop %v915
    %v917 = vsub.f32 %v830, %v916
    %v918 = vmul.f32 %v912, %v917
    %v919 = vadd.f32 %v916, %v918
    %s920 = scalar_lea.vmem %s8, 40
    %921 = vst [vmem:[%s920] sm:$0xff] %v919
    %v922 = vpack.c.bf16 %v919, %v919
    %923 = vmatpush.bf16.msra.mxu0 %v360
    %924 = vmatpush.bf16.msra.mxu0 %v357
    %925 = vmatpush.bf16.msra.mxu0 %v354
    %926 = vmatpush.bf16.msra.mxu0 %v351
    %927 = vmatpush.bf16.msra.mxu0 %v348
    %928 = vmatpush.bf16.msra.mxu0 %v345
    %929 = vmatpush.bf16.msra.mxu0 %v342
    %930 = vmatpush.bf16.msra.mxu0 %v339
    %931 = vmatmul.bf16.gmra.mxu0 %v922
    %v932 = vpop.f32.mrf.mxu0
    %v933 = vadd.f32 0.0, %v932
    %v934 = vpop.f32.mrf.mxu0
    %935 = vdwg.mxu0
    %936 = vmatpush.bf16.msra.mxu0 %v361
    %937 = vmatpush.bf16.msra.mxu0 %v358
    %938 = vmatpush.bf16.msra.mxu0 %v355
    %939 = vmatpush.bf16.msra.mxu0 %v352
    %940 = vmatpush.bf16.msra.mxu0 %v349
    %941 = vmatpush.bf16.msra.mxu0 %v346
    %942 = vmatpush.bf16.msra.mxu0 %v343
    %943 = vmatpush.bf16.msra.mxu0 %v340
    %944 = vmatmul.bf16.gmra.mxu0 %v922
    %v945 = vpop.f32.mrf.mxu0
    %v946 = vadd.f32 0.0, %v945
    %v947 = vpop.f32.mrf.mxu0
    %948 = vdwg.mxu0
    %949 = vmatpush.bf16.msra.mxu0 %v362
    %950 = vmatpush.bf16.msra.mxu0 %v359
    %951 = vmatpush.bf16.msra.mxu0 %v356
    %952 = vmatpush.bf16.msra.mxu0 %v353
    %953 = vmatpush.bf16.msra.mxu0 %v350
    %954 = vmatpush.bf16.msra.mxu0 %v347
    %955 = vmatpush.bf16.msra.mxu0 %v344
    %956 = vmatpush.bf16.msra.mxu0 %v341
    %957 = vmatmul.bf16.gmra.mxu0 %v922
    %v958 = vpop.f32.mrf.mxu0
    %v959 = vadd.f32 0.0, %v958
    %v960 = vpop.f32.mrf.mxu0
    %961 = vdwg.mxu0
    %v962 = vadd.f32 %v162, %v933
    %v963 = vxor.u32 %v962, 2147483648
    %v964 = vmul.f32 %v963, 1.442695
    %v965 = vpow.pop %v964
    %v966 = vadd.f32 %v965, 1.0
    %v967 = vrcp.pop %v966
    %v968 = vmul.f32 %v966, %v967
    %v969 = vsub.f32 1.0, %v968
    %v970 = vmul.f32 %v967, %v969
    %v971 = vadd.f32 %v967, %v970
    %vm972 = vweird.f32 %v966
    %vm973 = vweird.f32 %v967
    %vm974 = vmor %vm972, %vm973
    %v975 = vsel %vm974, %v967, %v971
    %v976 = vand.u32 2147483647, %v966
    %vm977 = vcmp.eq.f32.partialorder %v976, 8.507059e+37
    %v978 = vand.u32 %v966, 2147483648
    %v979 = vor.u32 1.1754944e-38, %v978
    %v980 = vsel %vm977, %v979, %v975
    %v981 = vmul.f32 1.0, %v980
    %v982 = vadd.f32 %v191, %v946
    %v983 = vxor.u32 %v982, 2147483648
    %v984 = vmul.f32 %v983, 1.442695
    %v985 = vpow.pop %v984
    %v986 = vadd.f32 %v985, 1.0
    %v987 = vrcp.pop %v986
    %v988 = vmul.f32 %v986, %v987
    %v989 = vsub.f32 1.0, %v988
    %v990 = vmul.f32 %v987, %v989
    %v991 = vadd.f32 %v987, %v990
    %vm992 = vweird.f32 %v986
    %vm993 = vweird.f32 %v987
    %vm994 = vmor %vm992, %vm993
    %v995 = vsel %vm994, %v987, %v991
    %v996 = vand.u32 2147483647, %v986
    %vm997 = vcmp.eq.f32.partialorder %v996, 8.507059e+37
    %v998 = vand.u32 %v986, 2147483648
    %v999 = vor.u32 1.1754944e-38, %v998
    %v1000 = vsel %vm997, %v999, %v995
    %v1001 = vmul.f32 1.0, %v1000
    %v1002 = vadd.f32 %v959, %v467
    %v1003 = vmul.f32 %v981, %v1002
    %v1004 = vadd.f32 %v220, %v1003
    %v1005 = vtanh.pop %v1004
    %v1006 = vsub.f32 %v919, %v1005
    %v1007 = vmul.f32 %v1001, %v1006
    %v1008 = vadd.f32 %v1005, %v1007
    %s1009 = scalar_lea.vmem %s8, 48
    %1010 = vst [vmem:[%s1009] sm:$0xff] %v1008
    %v1011 = vpack.c.bf16 %v1008, %v1008
    %1012 = vmatpush.bf16.msra.mxu0 %v360
    %1013 = vmatpush.bf16.msra.mxu0 %v357
    %1014 = vmatpush.bf16.msra.mxu0 %v354
    %1015 = vmatpush.bf16.msra.mxu0 %v351
    %1016 = vmatpush.bf16.msra.mxu0 %v348
    %1017 = vmatpush.bf16.msra.mxu0 %v345
    %1018 = vmatpush.bf16.msra.mxu0 %v342
    %1019 = vmatpush.bf16.msra.mxu0 %v339
    %1020 = vmatmul.bf16.gmra.mxu0 %v1011
    %v1021 = vpop.f32.mrf.mxu0
    %v1022 = vadd.f32 0.0, %v1021
    %v1023 = vpop.f32.mrf.mxu0
    %1024 = vdwg.mxu0
    %1025 = vmatpush.bf16.msra.mxu0 %v361
    %1026 = vmatpush.bf16.msra.mxu0 %v358
    %1027 = vmatpush.bf16.msra.mxu0 %v355
    %1028 = vmatpush.bf16.msra.mxu0 %v352
    %1029 = vmatpush.bf16.msra.mxu0 %v349
    %1030 = vmatpush.bf16.msra.mxu0 %v346
    %1031 = vmatpush.bf16.msra.mxu0 %v343
    %1032 = vmatpush.bf16.msra.mxu0 %v340
    %1033 = vmatmul.bf16.gmra.mxu0 %v1011
    %v1034 = vpop.f32.mrf.mxu0
    %v1035 = vadd.f32 0.0, %v1034
    %v1036 = vpop.f32.mrf.mxu0
    %1037 = vdwg.mxu0
    %1038 = vmatpush.bf16.msra.mxu0 %v362
    %1039 = vmatpush.bf16.msra.mxu0 %v359
    %1040 = vmatpush.bf16.msra.mxu0 %v356
    %1041 = vmatpush.bf16.msra.mxu0 %v353
    %1042 = vmatpush.bf16.msra.mxu0 %v350
    %1043 = vmatpush.bf16.msra.mxu0 %v347
    %1044 = vmatpush.bf16.msra.mxu0 %v344
    %1045 = vmatpush.bf16.msra.mxu0 %v341
    %1046 = vmatmul.bf16.gmra.mxu0 %v1011
    %v1047 = vpop.f32.mrf.mxu0
    %v1048 = vadd.f32 0.0, %v1047
    %v1049 = vpop.f32.mrf.mxu0
    %1050 = vdwg.mxu0
    %v1051 = vadd.f32 %v164, %v1022
    %v1052 = vxor.u32 %v1051, 2147483648
    %v1053 = vmul.f32 %v1052, 1.442695
    %v1054 = vpow.pop %v1053
    %v1055 = vadd.f32 %v1054, 1.0
    %v1056 = vrcp.pop %v1055
    %v1057 = vmul.f32 %v1055, %v1056
    %v1058 = vsub.f32 1.0, %v1057
    %v1059 = vmul.f32 %v1056, %v1058
    %v1060 = vadd.f32 %v1056, %v1059
    %vm1061 = vweird.f32 %v1055
    %vm1062 = vweird.f32 %v1056
    %vm1063 = vmor %vm1061, %vm1062
    %v1064 = vsel %vm1063, %v1056, %v1060
    %v1065 = vand.u32 2147483647, %v1055
    %vm1066 = vcmp.eq.f32.partialorder %v1065, 8.507059e+37
    %v1067 = vand.u32 %v1055, 2147483648
    %v1068 = vor.u32 1.1754944e-38, %v1067
    %v1069 = vsel %vm1066, %v1068, %v1064
    %v1070 = vmul.f32 1.0, %v1069
    %v1071 = vadd.f32 %v193, %v1035
    %v1072 = vxor.u32 %v1071, 2147483648
    %v1073 = vmul.f32 %v1072, 1.442695
    %v1074 = vpow.pop %v1073
    %v1075 = vadd.f32 %v1074, 1.0
    %v1076 = vrcp.pop %v1075
    %v1077 = vmul.f32 %v1075, %v1076
    %v1078 = vsub.f32 1.0, %v1077
    %v1079 = vmul.f32 %v1076, %v1078
    %v1080 = vadd.f32 %v1076, %v1079
    %vm1081 = vweird.f32 %v1075
    %vm1082 = vweird.f32 %v1076
    %vm1083 = vmor %vm1081, %vm1082
    %v1084 = vsel %vm1083, %v1076, %v1080
    %v1085 = vand.u32 2147483647, %v1075
    %vm1086 = vcmp.eq.f32.partialorder %v1085, 8.507059e+37
    %v1087 = vand.u32 %v1075, 2147483648
    %v1088 = vor.u32 1.1754944e-38, %v1087
    %v1089 = vsel %vm1086, %v1088, %v1084
    %v1090 = vmul.f32 1.0, %v1089
    %v1091 = vadd.f32 %v1048, %v467
    %v1092 = vmul.f32 %v1070, %v1091
    %v1093 = vadd.f32 %v222, %v1092
    %v1094 = vtanh.pop %v1093
    %v1095 = vsub.f32 %v1008, %v1094
    %v1096 = vmul.f32 %v1090, %v1095
    %v1097 = vadd.f32 %v1094, %v1096
    %s1098 = scalar_lea.vmem %s8, 56
    %1099 = vst [vmem:[%s1098] sm:$0xff] %v1097
    %v1100 = vpack.c.bf16 %v1097, %v1097
    %v1101 = vld [vmem:[%s6] sm:$0xf]
    %v1102 = vld [vmem:[%s6 + $0x4] sm:$0xf]
    %v1103 = vld [vmem:[%s6 + $0x8] sm:$0xf]
    %v1104 = vld [vmem:[%s6 + $0xc] sm:$0xf]
    %v1105 = vld [vmem:[%s6 + $0x10] sm:$0xf]
    %v1106 = vld [vmem:[%s6 + $0x14] sm:$0xf]
    %v1107 = vld [vmem:[%s6 + $0x18] sm:$0xf]
    %v1108 = vld [vmem:[%s6 + $0x1c] sm:$0xf]
    %v1109 = vld [vmem:[%s6 + $0x20] sm:$0xf]
    %v1110 = vld [vmem:[%s6 + $0x24] sm:$0xf]
    %v1111 = vld [vmem:[%s6 + $0x28] sm:$0xf]
    %v1112 = vld [vmem:[%s6 + $0x2c] sm:$0xf]
    %v1113 = vld [vmem:[%s6 + $0x30] sm:$0xf]
    %v1114 = vld [vmem:[%s6 + $0x34] sm:$0xf]
    %v1115 = vld [vmem:[%s6 + $0x38] sm:$0xf]
    %v1116 = vld [vmem:[%s6 + $0x3c] sm:$0xf]
    %v1117 = vld [vmem:[%s7] sm:$0x1]
    %v1119 = vperm.slane %v1117, 0
    %v1137 = vunpack.c.l.b16 %v1101
    %v1138 = vunpack.c.l.b16 %v1102
    %v1139 = vunpack.c.l.b16 %v1103
    %v1140 = vunpack.c.l.b16 %v1104
    %v1141 = vunpack.c.l.b16 %v1105
    %v1142 = vunpack.c.l.b16 %v1106
    %v1143 = vunpack.c.l.b16 %v1107
    %v1144 = vunpack.c.l.b16 %v1108
    %v1145 = vunpack.c.l.b16 %v1109
    %v1146 = vunpack.c.l.b16 %v1110
    %v1147 = vunpack.c.l.b16 %v1111
    %v1148 = vunpack.c.l.b16 %v1112
    %v1149 = vunpack.c.l.b16 %v1113
    %v1150 = vunpack.c.l.b16 %v1114
    %v1151 = vunpack.c.l.b16 %v1115
    %v1152 = vunpack.c.l.b16 %v1116
    %v1153 = vpack.c.b16 %v1138, %v1137
    %v1154 = vpack.c.b16 %v1140, %v1139
    %v1155 = vpack.c.b16 %v1142, %v1141
    %v1156 = vpack.c.b16 %v1144, %v1143
    %v1157 = vpack.c.b16 %v1146, %v1145
    %v1158 = vpack.c.b16 %v1148, %v1147
    %v1159 = vpack.c.b16 %v1150, %v1149
    %v1160 = vpack.c.b16 %v1152, %v1151
    %1169 = vmatpush.bf16.msra.mxu0 %v1160
    %1170 = vmatpush.bf16.msra.mxu0 %v1159
    %1171 = vmatpush.bf16.msra.mxu0 %v1158
    %1172 = vmatpush.bf16.msra.mxu0 %v1157
    %1173 = vmatpush.bf16.msra.mxu0 %v1156
    %1174 = vmatpush.bf16.msra.mxu0 %v1155
    %1175 = vmatpush.bf16.msra.mxu0 %v1154
    %1176 = vmatpush.bf16.msra.mxu0 %v1153
    %1177 = vmatmul.bf16.gmra.mxu0 %v1100
    %v1178 = vpop.f32.mrf.mxu0
    %v1179 = vadd.f32 %v1119, %v1178
    %v1180 = vpop.f32.mrf.mxu0
    %1181 = vdwg.mxu0
    %v1182 = vsel %vm124, %v1179, -inf
    %1183 = vmax.xlane.f32.xlu0 %v1182
    %v1184 = vpop.xlane.xlu0 %1183
    %v1185 = vsub.f32 %v1179, %v1184
    %v1186 = vmul.f32 %v1185, 1.442695
    %v1187 = vpow.pop %v1186
    %v1188 = vsel %vm124, %v1187, 0.0
    %1189 = vadd.xlane.f32.xlu0 %v1188
    %v1190 = vpop.xlane.xlu0 %1189
    %v1191 = vlog2.pop %v1190
    %v1192 = vmul.f32 %v1191, 0.6931472
    %v1193 = vadd.f32 %v1192, %v1184
    %v1194 = vsub.f32 %v1179, %v1193
    %1195 = vst.msk [vmem:[%s9] sm:$0xff] %vm124, %v1194
    // Predicated region
    $region38: #{char_rnn_forward.1} parent=1 // pred_check
      _
    $region39: #{char_rnn_forward.1} parent=1 // pred_check_branch
      %1197 = sbr.rel (0) target = $region41
    $region40: #{char_rnn_forward.1} parent=1 // pred_region
      _
    $region41: #{char_rnn_forward.1} parent=1 // pred_fallthru
      _
    // Predicated region
    $region42: #{char_rnn_forward.1} parent=1 // pred_check
      _
    $region43: #{char_rnn_forward.1} parent=1 // pred_check_branch
      %1199 = sbr.rel (0) target = $region45
    $region44: #{char_rnn_forward.1} parent=1 // pred_region
      _
    $region45: #{char_rnn_forward.1} parent=1 // pred_fallthru
      _
    // Predicated region
    $region46: #{char_rnn_forward.1} parent=1 // pred_check
      _
    $region47: #{char_rnn_forward.1} parent=1 // pred_check_branch
      %1201 = sbr.rel (0) target = $region49
    $region48: #{char_rnn_forward.1} parent=1 // pred_region
      _
    $region49: #{char_rnn_forward.1} parent=1 // pred_fallthru
      _
    // Predicated region
    $region50: #{char_rnn_forward.1} parent=1 // pred_check
      _
    $region51: #{char_rnn_forward.1} parent=1 // pred_check_branch
      %1203 = sbr.rel (0) target = $region53
    $region52: #{char_rnn_forward.1} parent=1 // pred_region
      _
    $region53: #{char_rnn_forward.1} parent=1 // pred_fallthru
      _
    %1204 = vsyncpa [#allocation3], 1

</llo_original>
